<compile_context>
chip_gen: v6e
topology: v6e:2x2x1
jax: 0.10.0
libtpu: 0.0.40
codegen_flags: <defaults>
</compile_context>

<pallas_src>
import jax
import jax.numpy as jnp
from jax.experimental import pallas as pl
from jax.experimental.pallas import tpu as pltpu


def _round_up(x, m):
    return ((x + m - 1) // m) * m


LBLK_MAX = 1024   # lanes per grid step; 2 buffers x (Kp x 4*LBLK bf16) stays
                  # well under the default scoped VMEM on v5e/v6e/v7x.


# ------------------------------------------------------------------ kernels --

def _conv_pool_kernel(p_ref, w_ref, b_ref, o_ref):
    """Fused conv-as-GEMM + bias + ReLU + 2x2 maxpool (single wide matmul).

    p_ref: (Kp, 4*Lblk) bf16  patch matrix; the 4 pooling-window slabs are
                              contiguous lane blocks of width Lblk.
    w_ref: (O, Kp)      bf16  reshaped conv weights.
    b_ref: (O, 1)       f32   bias.
    o_ref: (O, Lblk)          pooled activation (channel-major, lane-dense).
    """
    lblk = o_ref.shape[-1]
    acc = jnp.dot(w_ref[...], p_ref[...], preferred_element_type=jnp.float32)
    # Running pairwise max over the four pooling-window lane slices.
    m = jnp.maximum(acc[:, 0 * lblk:1 * lblk], acc[:, 1 * lblk:2 * lblk])
    m = jnp.maximum(m, acc[:, 2 * lblk:3 * lblk])
    m = jnp.maximum(m, acc[:, 3 * lblk:4 * lblk])
    o_ref[...] = jnp.maximum(m + b_ref[...], 0.0).astype(o_ref.dtype)


def _linear_kernel(x_ref, w_ref, b_ref, o_ref):
    """o = x @ w + b  (single small tile, whole arrays VMEM-resident)."""
    o_ref[...] = (jnp.dot(x_ref[...], w_ref[...],
                          preferred_element_type=jnp.float32) + b_ref[...])


# ----------------------------------------------------------------- wrappers --

def _pool_patches(x_cnhw, lblk, k=5, pad=2):
    """x: (C, N, H, W) -> (C*k*k, nT*4*lblk) bf16 patch matrix.

    For L-tile t, columns [t*4*lblk, (t+1)*4*lblk) hold the four pooling
    window slabs g=(yb,xb), each lblk lanes wide, covering pooled positions
    [t*lblk, (t+1)*lblk).  Row = (c, dy, dx) tap (matches w.reshape(O,C*k*k));
    pooled column = n*Ho*Wo + ho*Wo + wo.
    """
    C, N, H, W = x_cnhw.shape
    Ho, Wo = H // 2, W // 2
    K = C * k * k
    L = N * Ho * Wo
    Lp = _round_up(L, lblk)
    nT = Lp // lblk

    # Cast to bf16 BEFORE the 25x expansion -> half the im2col / DMA bytes.
    xp = jnp.pad(x_cnhw.astype(jnp.bfloat16),
                 ((0, 0), (0, 0), (pad, pad), (pad, pad)))

    slabs = []
    for yb in range(2):
        for xb in range(2):
            taps = jnp.stack(
                [xp[:, :,
                    yb + dy: yb + dy + 2 * Ho - 1: 2,
                    xb + dx: xb + dx + 2 * Wo - 1: 2]
                 for dy in range(k) for dx in range(k)],
                axis=1)                               # (C, k*k, N, Ho, Wo)
            slab = taps.reshape(K, L)
            slab = jnp.pad(slab, ((0, 0), (0, Lp - L)))
            slabs.append(slab.reshape(K, nT, lblk))
    p = jnp.concatenate(slabs, axis=-1)               # (K, nT, 4*lblk)
    return p.reshape(K, nT * 4 * lblk)


def conv_relu_pool(x_cnhw, wmat, bias, out_dtype):
    """x: (C, N, H, W); wmat: (O, Kp) bf16 (padded, reshaped OIHW weights);
    bias: (O, 1) f32.  Returns (O, N, H//2, W//2) in out_dtype (channel-major,
    ready to feed the next layer's im2col)."""
    C, N, H, W = x_cnhw.shape
    O, Kp = wmat.shape
    Ho, Wo = H // 2, W // 2
    K = C * 25
    L = N * Ho * Wo
    lblk = min(LBLK_MAX, _round_up(L, 128))
    Lp = _round_up(L, lblk)
    nT = Lp // lblk

    patches = _pool_patches(x_cnhw, lblk)                  # (K, nT*4*lblk) bf16
    patches = jnp.pad(patches, ((0, Kp - K), (0, 0)))      # zero K-pad rows

    out = pl.pallas_call(
        _conv_pool_kernel,
        out_shape=jax.ShapeDtypeStruct((O, Lp), out_dtype),
        grid=(nT,),
        in_specs=[
            pl.BlockSpec((Kp, 4 * lblk), lambda i: (0, i)),
            pl.BlockSpec((O, Kp), lambda i: (0, 0)),
            pl.BlockSpec((O, 1), lambda i: (0, 0)),
        ],
        out_specs=pl.BlockSpec((O, lblk), lambda i: (0, i)),
        compiler_params=pltpu.CompilerParams(
            dimension_semantics=("parallel",)),
    )(patches, wmat, bias)

    return out[:, :L].reshape(O, N, Ho, Wo)


def pallas_linear(x, w_t_pad, b):
    """x: (N, F); w_t_pad: (Fp, Np) bf16 pre-transposed/padded; b: (Out,) f32.
    Returns (N, Out) f32."""
    N, F = x.shape
    Fp, Np = w_t_pad.shape
    Out = b.shape[0]
    Mp = _round_up(N, 8)           # tiny sublane pad only

    xp = jnp.pad(x, ((0, Mp - N), (0, Fp - F))).astype(jnp.bfloat16)
    bp = jnp.pad(b.reshape(1, Out), ((0, 0), (0, Np - Out)))

    out = pl.pallas_call(
        _linear_kernel,
        out_shape=jax.ShapeDtypeStruct((Mp, Np), jnp.float32),
    )(xp, w_t_pad, bp)
    return out[:N, :Out]


def prepare_params(params):
    """One-time weight prep (reshape / pad / cast), hoisted out of forward."""
    def prep_conv(w, b):
        O, C, kh, kw = w.shape
        K = C * kh * kw
        Kp = _round_up(K, 8)
        wm = jnp.pad(w.reshape(O, K),
                     ((0, 0), (0, Kp - K))).astype(jnp.bfloat16)
        return wm, b.reshape(O, 1).astype(jnp.float32)

    w1m, b1 = prep_conv(params["w1"], params["b1"])
    w2m, b2 = prep_conv(params["w2"], params["b2"])

    Out, F = params["w_out"].shape
    Np = _round_up(Out, 128)
    Fp = _round_up(F, 8)
    w_out_t = jnp.pad(params["w_out"].T,
                      ((0, Fp - F), (0, Np - Out))).astype(jnp.bfloat16)
    b_out = params["b_out"].astype(jnp.float32)     # unpadded: keeps true Out
    return {"w1m": w1m, "b1": b1, "w2m": w2m, "b2": b2,
            "w_out_t": w_out_t, "b_out": b_out}


def cnn_forward(x_nchw, prep):
    """Mirrors CNN.forward: returns (logits (N, 10), flat features (N, 1568))."""
    N = x_nchw.shape[0]
    x = jnp.transpose(x_nchw, (1, 0, 2, 3))                 # NCHW -> (C, N, H, W)
    a1 = conv_relu_pool(x, prep["w1m"], prep["b1"],
                        out_dtype=jnp.bfloat16)             # (16, N, 14, 14)
    a2 = conv_relu_pool(a1, prep["w2m"], prep["b2"],
                        out_dtype=jnp.float32)              # (32, N,  7,  7)
    # PyTorch x.view(N, -1) flattens in (c, y, x) order.
    flat = jnp.transpose(a2, (1, 0, 2, 3)).reshape(N, -1)   # (N, 1568) f32
    logits = pallas_linear(flat, prep["w_out_t"], prep["b_out"])
    return logits, flat


# ---------------------------------------------------------------- reference --

def reference_forward(x, p):
    """Pure-JAX (XLA, f32) reference of the PyTorch forward, NCHW throughout."""
    def conv(x, w, b):
        y = jax.lax.conv_general_dilated(
            x, w, window_strides=(1, 1), padding=((2, 2), (2, 2)),
            dimension_numbers=("NCHW", "OIHW", "NCHW"))
        return jnp.maximum(y + b[None, :, None, None], 0.0)

    def pool(x):
        return jax.lax.reduce_window(x, -jnp.inf, jax.lax.max,
                                     (1, 1, 2, 2), (1, 1, 2, 2), "VALID")

    y = pool(conv(x, p["w1"], p["b1"]))
    y = pool(conv(y, p["w2"], p["b2"]))
    flat = y.reshape(y.shape[0], -1)
    logits = flat @ p["w_out"].T + p["b_out"]
    return logits, flat


# --------------------------------------------------------------------- main --

def init_params(key):
    """Deterministic init, PyTorch-style U(-1/sqrt(fan_in), 1/sqrt(fan_in))."""
    ks = jax.random.split(key, 6)

    def u(k, shape, fan_in):
        bound = 1.0 / jnp.sqrt(jnp.float32(fan_in))
        return jax.random.uniform(k, shape, jnp.float32, -bound, bound)

    return {
        "w1": u(ks[0], (16, 1, 5, 5), 1 * 5 * 5),
        "b1": u(ks[1], (16,), 1 * 5 * 5),
        "w2": u(ks[2], (32, 16, 5, 5), 16 * 5 * 5),
        "b2": u(ks[3], (32,), 16 * 5 * 5),
        "w_out": u(ks[4], (10, 32 * 7 * 7), 32 * 7 * 7),
        "b_out": u(ks[5], (10,), 32 * 7 * 7),
    }


if __name__ == "__main__":
    key = jax.random.PRNGKey(0)
    k_x, k_p = jax.random.split(key)

    # Spatial size is fixed at 28x28 by the hard-coded 32*7*7 Linear fan-in.
    x = jax.random.normal(k_x, (2, 1, 28, 28), jnp.float32)
    params = init_params(k_p)
    prep = prepare_params(params)          # hoisted one-time weight prep

    fwd = jax.jit(cnn_forward)
    logits, flat = fwd(x, prep)
    jax.block_until_ready((logits, flat))

    ref_logits, ref_flat = reference_forward(x, params)
    assert logits.shape == (2, 10) and flat.shape == (2, 32 * 7 * 7)
    assert jnp.allclose(flat, ref_flat, atol=5e-2, rtol=5e-2)
    assert jnp.allclose(logits, ref_logits, atol=5e-2, rtol=5e-2)

    print("KERNEL_OK")
</pallas_src>

<mosaic_0001>
module attributes {stable_mosaic.version = 11 : i64} {
  func.func @_conv_pool_kernel(%arg0: i32, %arg1: memref<32x2048xbf16, #tpu.memory_space<vmem>>, %arg2: memref<16x32xbf16, #tpu.memory_space<vmem>>, %arg3: memref<16x1xf32, #tpu.memory_space<vmem>>, %arg4: memref<16x512xbf16, #tpu.memory_space<vmem>>) attributes {dimension_semantics = [#tpu.dimension_semantics<parallel>], iteration_bounds = array<i64: 1>, scalar_prefetch = 0 : i64, scratch_operands = 0 : i64, tpu.core_type = #tpu.core_type<tc>, window_params = [{transform_indices = @transform_0, window_bounds = array<i64: 32, 2048>}, {pipeline_mode = #tpu.pipeline_mode<synchronous>, transform_indices = @transform_1, window_bounds = array<i64: 16, 32>}, {pipeline_mode = #tpu.pipeline_mode<synchronous>, transform_indices = @transform_2, window_bounds = array<i64: 16, 1>}, {transform_indices = @transform_3, window_bounds = array<i64: 16, 512>}]} {
    %c0 = arith.constant 0 : index
    %c0_0 = arith.constant 0 : index
    %0 = vector.load %arg2[%c0, %c0_0] : memref<16x32xbf16, #tpu.memory_space<vmem>>, vector<16x32xbf16>
    %c0_1 = arith.constant 0 : index
    %c0_2 = arith.constant 0 : index
    %1 = vector.load %arg1[%c0_1, %c0_2] : memref<32x2048xbf16, #tpu.memory_space<vmem>>, vector<32x2048xbf16>
    %cst = arith.constant dense<0.000000e+00> : vector<16x2048xf32>
    %2 = tpu.matmul %0, %1, %cst {dimension_numbers = #tpu.dot_dimension_numbers<[1], [0], [0], [1], [0, 0, 1, 1], [], []>} : vector<16x32xbf16>, vector<32x2048xbf16>, vector<16x2048xf32> -> vector<16x2048xf32>
    %3 = vector.extract_strided_slice %2 {offsets = [0, 0], sizes = [16, 512], strides = [1, 1]} : vector<16x2048xf32> to vector<16x512xf32>
    %4 = vector.extract_strided_slice %2 {offsets = [0, 512], sizes = [16, 512], strides = [1, 1]} : vector<16x2048xf32> to vector<16x512xf32>
    %5 = arith.maximumf %3, %4 : vector<16x512xf32>
    %6 = vector.extract_strided_slice %2 {offsets = [0, 1024], sizes = [16, 512], strides = [1, 1]} : vector<16x2048xf32> to vector<16x512xf32>
    %7 = arith.maximumf %5, %6 : vector<16x512xf32>
    %8 = vector.extract_strided_slice %2 {offsets = [0, 1536], sizes = [16, 512], strides = [1, 1]} : vector<16x2048xf32> to vector<16x512xf32>
    %9 = arith.maximumf %7, %8 : vector<16x512xf32>
    %c0_3 = arith.constant 0 : index
    %c0_4 = arith.constant 0 : index
    %10 = vector.load %arg3[%c0_3, %c0_4] : memref<16x1xf32, #tpu.memory_space<vmem>>, vector<16x1xf32>
    %11 = vector.broadcast %10 : vector<16x1xf32> to vector<16x512xf32>
    %12 = arith.addf %9, %11 : vector<16x512xf32>
    %cst_5 = arith.constant 0.000000e+00 : f32
    %13 = vector.broadcast %cst_5 : f32 to vector<16x512xf32>
    %14 = arith.maximumf %12, %13 : vector<16x512xf32>
    %15 = arith.truncf %14 : vector<16x512xf32> to vector<16x512xbf16>
    %c0_6 = arith.constant 0 : index
    %c0_7 = arith.constant 0 : index
    %16 = vector.load %arg4[%c0_6, %c0_7] : memref<16x512xbf16, #tpu.memory_space<vmem>>, vector<16x512xbf16>
    tpu.vector_store %arg4[%c0_6, %c0_7], %15 {strides = array<i32>} : memref<16x512xbf16, #tpu.memory_space<vmem>>, vector<16x512xbf16>,
    return
  }
  func.func @transform_0(%arg0: i32) -> (i32, i32) {
    %c0_i32 = arith.constant 0 : i32
    %c0_i32_0 = arith.constant 0 : i32
    return %c0_i32, %arg0 : i32, i32
  }
  func.func @transform_1(%arg0: i32) -> (i32, i32) {
    %c0_i32 = arith.constant 0 : i32
    %c0_i32_0 = arith.constant 0 : i32
    %c0_i32_1 = arith.constant 0 : i32
    return %c0_i32, %c0_i32_0 : i32, i32
  }
  func.func @transform_2(%arg0: i32) -> (i32, i32) {
    %c0_i32 = arith.constant 0 : i32
    %c0_i32_0 = arith.constant 0 : i32
    %c0_i32_1 = arith.constant 0 : i32
    return %c0_i32, %c0_i32_0 : i32, i32
  }
  func.func @transform_3(%arg0: i32) -> (i32, i32) {
    %c0_i32 = arith.constant 0 : i32
    %c0_i32_0 = arith.constant 0 : i32
    return %c0_i32, %arg0 : i32, i32
  }
}

module attributes {stable_mosaic.version = 11 : i64} {
  func.func @_conv_pool_kernel(%arg0: i32, %arg1: memref<400x512xbf16, #tpu.memory_space<vmem>>, %arg2: memref<32x400xbf16, #tpu.memory_space<vmem>>, %arg3: memref<32x1xf32, #tpu.memory_space<vmem>>, %arg4: memref<32x128xf32, #tpu.memory_space<vmem>>) attributes {dimension_semantics = [#tpu.dimension_semantics<parallel>], iteration_bounds = array<i64: 1>, scalar_prefetch = 0 : i64, scratch_operands = 0 : i64, tpu.core_type = #tpu.core_type<tc>, window_params = [{transform_indices = @transform_0, window_bounds = array<i64: 400, 512>}, {pipeline_mode = #tpu.pipeline_mode<synchronous>, transform_indices = @transform_1, window_bounds = array<i64: 32, 400>}, {pipeline_mode = #tpu.pipeline_mode<synchronous>, transform_indices = @transform_2, window_bounds = array<i64: 32, 1>}, {transform_indices = @transform_3, window_bounds = array<i64: 32, 128>}]} {
    %c0 = arith.constant 0 : index
    %c0_0 = arith.constant 0 : index
    %0 = vector.load %arg2[%c0, %c0_0] : memref<32x400xbf16, #tpu.memory_space<vmem>>, vector<32x400xbf16>
    %c0_1 = arith.constant 0 : index
    %c0_2 = arith.constant 0 : index
    %1 = vector.load %arg1[%c0_1, %c0_2] : memref<400x512xbf16, #tpu.memory_space<vmem>>, vector<400x512xbf16>
    %cst = arith.constant dense<0.000000e+00> : vector<32x512xf32>
    %2 = tpu.matmul %0, %1, %cst {dimension_numbers = #tpu.dot_dimension_numbers<[1], [0], [0], [1], [0, 0, 1, 1], [], []>} : vector<32x400xbf16>, vector<400x512xbf16>, vector<32x512xf32> -> vector<32x512xf32>
    %3 = vector.extract_strided_slice %2 {offsets = [0, 0], sizes = [32, 128], strides = [1, 1]} : vector<32x512xf32> to vector<32x128xf32>
    %4 = vector.extract_strided_slice %2 {offsets = [0, 128], sizes = [32, 128], strides = [1, 1]} : vector<32x512xf32> to vector<32x128xf32>
    %5 = arith.maximumf %3, %4 : vector<32x128xf32>
    %6 = vector.extract_strided_slice %2 {offsets = [0, 256], sizes = [32, 128], strides = [1, 1]} : vector<32x512xf32> to vector<32x128xf32>
    %7 = arith.maximumf %5, %6 : vector<32x128xf32>
    %8 = vector.extract_strided_slice %2 {offsets = [0, 384], sizes = [32, 128], strides = [1, 1]} : vector<32x512xf32> to vector<32x128xf32>
    %9 = arith.maximumf %7, %8 : vector<32x128xf32>
    %c0_3 = arith.constant 0 : index
    %c0_4 = arith.constant 0 : index
    %10 = vector.load %arg3[%c0_3, %c0_4] : memref<32x1xf32, #tpu.memory_space<vmem>>, vector<32x1xf32>
    %11 = vector.broadcast %10 : vector<32x1xf32> to vector<32x128xf32>
    %12 = arith.addf %9, %11 : vector<32x128xf32>
    %cst_5 = arith.constant 0.000000e+00 : f32
    %13 = vector.broadcast %cst_5 : f32 to vector<32x128xf32>
    %14 = arith.maximumf %12, %13 : vector<32x128xf32>
    %c0_6 = arith.constant 0 : index
    %c0_7 = arith.constant 0 : index
    %15 = vector.load %arg4[%c0_6, %c0_7] : memref<32x128xf32, #tpu.memory_space<vmem>>, vector<32x128xf32>
    tpu.vector_store %arg4[%c0_6, %c0_7], %14 {strides = array<i32>} : memref<32x128xf32, #tpu.memory_space<vmem>>, vector<32x128xf32>,
    return
  }
  func.func @transform_0(%arg0: i32) -> (i32, i32) {
    %c0_i32 = arith.constant 0 : i32
    %c0_i32_0 = arith.constant 0 : i32
    return %c0_i32, %arg0 : i32, i32
  }
  func.func @transform_1(%arg0: i32) -> (i32, i32) {
    %c0_i32 = arith.constant 0 : i32
    %c0_i32_0 = arith.constant 0 : i32
    %c0_i32_1 = arith.constant 0 : i32
    return %c0_i32, %c0_i32_0 : i32, i32
  }
  func.func @transform_2(%arg0: i32) -> (i32, i32) {
    %c0_i32 = arith.constant 0 : i32
    %c0_i32_0 = arith.constant 0 : i32
    %c0_i32_1 = arith.constant 0 : i32
    return %c0_i32, %c0_i32_0 : i32, i32
  }
  func.func @transform_3(%arg0: i32) -> (i32, i32) {
    %c0_i32 = arith.constant 0 : i32
    %c0_i32_0 = arith.constant 0 : i32
    return %c0_i32, %arg0 : i32, i32
  }
}

module attributes {stable_mosaic.version = 11 : i64} {
  func.func @_linear_kernel(%arg0: memref<8x1568xbf16, #tpu.memory_space<vmem>>, %arg1: memref<1568x128xbf16, #tpu.memory_space<vmem>>, %arg2: memref<1x128xf32, #tpu.memory_space<vmem>>, %arg3: memref<8x128xf32, #tpu.memory_space<vmem>>) attributes {dimension_semantics = [], scalar_prefetch = 0 : i64, scratch_operands = 0 : i64, tpu.core_type = #tpu.core_type<tc>} {
    %c0 = arith.constant 0 : index
    %c0_0 = arith.constant 0 : index
    %0 = vector.load %arg0[%c0, %c0_0] : memref<8x1568xbf16, #tpu.memory_space<vmem>>, vector<8x1568xbf16>
    %c0_1 = arith.constant 0 : index
    %c0_2 = arith.constant 0 : index
    %1 = vector.load %arg1[%c0_1, %c0_2] : memref<1568x128xbf16, #tpu.memory_space<vmem>>, vector<1568x128xbf16>
    %cst = arith.constant dense<0.000000e+00> : vector<8x128xf32>
    %2 = tpu.matmul %0, %1, %cst {dimension_numbers = #tpu.dot_dimension_numbers<[1], [0], [0], [1], [0, 0, 1, 1], [], []>} : vector<8x1568xbf16>, vector<1568x128xbf16>, vector<8x128xf32> -> vector<8x128xf32>
    %c0_3 = arith.constant 0 : index
    %c0_4 = arith.constant 0 : index
    %3 = vector.load %arg2[%c0_3, %c0_4] : memref<1x128xf32, #tpu.memory_space<vmem>>, vector<1x128xf32>
    %4 = vector.broadcast %3 : vector<1x128xf32> to vector<8x128xf32>
    %5 = arith.addf %2, %4 : vector<8x128xf32>
    %c0_5 = arith.constant 0 : index
    %c0_6 = arith.constant 0 : index
    %6 = vector.load %arg3[%c0_5, %c0_6] : memref<8x128xf32, #tpu.memory_space<vmem>>, vector<8x128xf32>
    tpu.vector_store %arg3[%c0_5, %c0_6], %5 {strides = array<i32>} : memref<8x128xf32, #tpu.memory_space<vmem>>, vector<8x128xf32>,
    return
  }
}

</mosaic_0001>

<llo_original>
// kernel: cnn_forward.3
$region0: #{cnn_forward.3}
  #allocation0 [shape = 'u32[]', space=smem, size = 0x4, offset = 0x4, fixed_abs, tag = 'smem constant byte address 0x4 - core index']
  #allocation1 [shape = 'u32[144,128]{1,0:T(1,128)}', space=vmem, size = 0x12000, scoped, tag = 'internal scratch']
  %s0 = inlined_call_operand.vmem [shape: bf16[32,2048], index: 0, kind: input, shape index: {}]
  %s1 = inlined_call_operand.vmem [shape: bf16[16,32], index: 1, kind: input, shape index: {}]
  %s2 = inlined_call_operand.vmem [shape: f32[16,1], index: 2, kind: input, shape index: {}]
  %s3 = inlined_call_operand.vmem [shape: bf16[16,512], index: 3, kind: output, shape index: {}]
  %s4 = sld [smem:[#allocation0]]
  $region22: #{cnn_forward.3} parent=0
    _
  %s6 = ssub.s32 1, %s4
  %s7 = scalar_select 0, %s6, %s4
  // Predicated region
  $region2: #{cnn_forward.3} parent=0 // pred_check
    _
  $region3: #{cnn_forward.3} parent=0 // pred_check_branch
    %9 = sbr.rel (0) target = $region5
  $region4: #{cnn_forward.3} parent=0 // pred_region
    _
  $region5: #{cnn_forward.3} parent=0 // pred_fallthru
    _
  // Predicated region
  $region6: #{cnn_forward.3} parent=0 // pred_check
    _
  $region7: #{cnn_forward.3} parent=0 // pred_check_branch
    %11 = sbr.rel (0) target = $region9
  $region8: #{cnn_forward.3} parent=0 // pred_region
    _
  $region9: #{cnn_forward.3} parent=0 // pred_fallthru
    _
  // Predicated region
  $region10: #{cnn_forward.3} parent=0 // pred_check
    _
  $region11: #{cnn_forward.3} parent=0 // pred_check_branch
    %13 = sbr.rel (0) target = $region13
  $region12: #{cnn_forward.3} parent=0 // pred_region
    _
  $region13: #{cnn_forward.3} parent=0 // pred_fallthru
    _
  %v15 = vld [vmem:[%s1] sm:$0xf]
  %v16 = vld [vmem:[%s1 + $0x4] sm:$0xf]
  %v17 = vld [vmem:[%s0] sm:$0xff]
  %v18 = vld [vmem:[%s0 + $0x8] sm:$0xff]
  %v19 = vld [vmem:[%s0 + $0x10] sm:$0xff]
  %v20 = vld [vmem:[%s0 + $0x18] sm:$0xff]
  %v21 = vld [vmem:[%s0 + $0x20] sm:$0xff]
  %v22 = vld [vmem:[%s0 + $0x28] sm:$0xff]
  %v23 = vld [vmem:[%s0 + $0x30] sm:$0xff]
  %v24 = vld [vmem:[%s0 + $0x38] sm:$0xff]
  %v25 = vld [vmem:[%s0 + $0x40] sm:$0xff]
  %v26 = vld [vmem:[%s0 + $0x48] sm:$0xff]
  %v27 = vld [vmem:[%s0 + $0x50] sm:$0xff]
  %v28 = vld [vmem:[%s0 + $0x58] sm:$0xff]
  %v29 = vld [vmem:[%s0 + $0x60] sm:$0xff]
  %v30 = vld [vmem:[%s0 + $0x68] sm:$0xff]
  %v31 = vld [vmem:[%s0 + $0x70] sm:$0xff]
  %v32 = vld [vmem:[%s0 + $0x78] sm:$0xff]
  %v33 = vld [vmem:[%s0 + $0x80] sm:$0xff]
  %v34 = vld [vmem:[%s0 + $0x88] sm:$0xff]
  %v35 = vld [vmem:[%s0 + $0x90] sm:$0xff]
  %v36 = vld [vmem:[%s0 + $0x98] sm:$0xff]
  %v37 = vld [vmem:[%s0 + $0xa0] sm:$0xff]
  %v38 = vld [vmem:[%s0 + $0xa8] sm:$0xff]
  %v39 = vld [vmem:[%s0 + $0xb0] sm:$0xff]
  %v40 = vld [vmem:[%s0 + $0xb8] sm:$0xff]
  %v41 = vld [vmem:[%s0 + $0xc0] sm:$0xff]
  %v42 = vld [vmem:[%s0 + $0xc8] sm:$0xff]
  %v43 = vld [vmem:[%s0 + $0xd0] sm:$0xff]
  %v44 = vld [vmem:[%s0 + $0xd8] sm:$0xff]
  %v45 = vld [vmem:[%s0 + $0xe0] sm:$0xff]
  %v46 = vld [vmem:[%s0 + $0xe8] sm:$0xff]
  %v47 = vld [vmem:[%s0 + $0xf0] sm:$0xff]
  %v48 = vld [vmem:[%s0 + $0xf8] sm:$0xff]
  %v51 = vunpack.c.l.b16 %v15
  %v52 = vunpack.c.l.b16 %v16
  %v53 = vpack.c.b16 %v52, %v51
  %v86 = vunpack.c.l.b16 %v17
  %v87 = vunpack.c.h.b16 %v17
  %v88 = vunpack.c.l.b16 %v18
  %v89 = vunpack.c.h.b16 %v18
  %v90 = vunpack.c.l.b16 %v19
  %v91 = vunpack.c.h.b16 %v19
  %v92 = vunpack.c.l.b16 %v20
  %v93 = vunpack.c.h.b16 %v20
  %v94 = vunpack.c.l.b16 %v21
  %v95 = vunpack.c.h.b16 %v21
  %v96 = vunpack.c.l.b16 %v22
  %v97 = vunpack.c.h.b16 %v22
  %v98 = vunpack.c.l.b16 %v23
  %v99 = vunpack.c.h.b16 %v23
  %v100 = vunpack.c.l.b16 %v24
  %v101 = vunpack.c.h.b16 %v24
  %v102 = vunpack.c.l.b16 %v25
  %v103 = vunpack.c.h.b16 %v25
  %v104 = vunpack.c.l.b16 %v26
  %v105 = vunpack.c.h.b16 %v26
  %v106 = vunpack.c.l.b16 %v27
  %v107 = vunpack.c.h.b16 %v27
  %v108 = vunpack.c.l.b16 %v28
  %v109 = vunpack.c.h.b16 %v28
  %v110 = vunpack.c.l.b16 %v29
  %v111 = vunpack.c.h.b16 %v29
  %v112 = vunpack.c.l.b16 %v30
  %v113 = vunpack.c.h.b16 %v30
  %v114 = vunpack.c.l.b16 %v31
  %v115 = vunpack.c.h.b16 %v31
  %v116 = vunpack.c.l.b16 %v32
  %v117 = vunpack.c.h.b16 %v32
  %v118 = vunpack.c.l.b16 %v33
  %v119 = vunpack.c.h.b16 %v33
  %v120 = vunpack.c.l.b16 %v34
  %v121 = vunpack.c.h.b16 %v34
  %v122 = vunpack.c.l.b16 %v35
  %v123 = vunpack.c.h.b16 %v35
  %v124 = vunpack.c.l.b16 %v36
  %v125 = vunpack.c.h.b16 %v36
  %v126 = vunpack.c.l.b16 %v37
  %v127 = vunpack.c.h.b16 %v37
  %v128 = vunpack.c.l.b16 %v38
  %v129 = vunpack.c.h.b16 %v38
  %v130 = vunpack.c.l.b16 %v39
  %v131 = vunpack.c.h.b16 %v39
  %v132 = vunpack.c.l.b16 %v40
  %v133 = vunpack.c.h.b16 %v40
  %v134 = vunpack.c.l.b16 %v41
  %v135 = vunpack.c.h.b16 %v41
  %v136 = vunpack.c.l.b16 %v42
  %v137 = vunpack.c.h.b16 %v42
  %v138 = vunpack.c.l.b16 %v43
  %v139 = vunpack.c.h.b16 %v43
  %v140 = vunpack.c.l.b16 %v44
  %v141 = vunpack.c.h.b16 %v44
  %v142 = vunpack.c.l.b16 %v45
  %v143 = vunpack.c.h.b16 %v45
  %v144 = vunpack.c.l.b16 %v46
  %v145 = vunpack.c.h.b16 %v46
  %v146 = vunpack.c.l.b16 %v47
  %v147 = vunpack.c.h.b16 %v47
  %v148 = vunpack.c.l.b16 %v48
  %v149 = vunpack.c.h.b16 %v48
  %v150 = vpack.c.b16 %v102, %v86
  %v151 = vpack.c.b16 %v103, %v87
  %v152 = vpack.c.b16 %v104, %v88
  %v153 = vpack.c.b16 %v105, %v89
  %v154 = vpack.c.b16 %v106, %v90
  %v155 = vpack.c.b16 %v107, %v91
  %v156 = vpack.c.b16 %v108, %v92
  %v157 = vpack.c.b16 %v109, %v93
  %v158 = vpack.c.b16 %v110, %v94
  %v159 = vpack.c.b16 %v111, %v95
  %v160 = vpack.c.b16 %v112, %v96
  %v161 = vpack.c.b16 %v113, %v97
  %v162 = vpack.c.b16 %v114, %v98
  %v163 = vpack.c.b16 %v115, %v99
  %v164 = vpack.c.b16 %v116, %v100
  %v165 = vpack.c.b16 %v117, %v101
  %v166 = vpack.c.b16 %v134, %v118
  %v167 = vpack.c.b16 %v135, %v119
  %v168 = vpack.c.b16 %v136, %v120
  %v169 = vpack.c.b16 %v137, %v121
  %v170 = vpack.c.b16 %v138, %v122
  %v171 = vpack.c.b16 %v139, %v123
  %v172 = vpack.c.b16 %v140, %v124
  %v173 = vpack.c.b16 %v141, %v125
  %v174 = vpack.c.b16 %v142, %v126
  %v175 = vpack.c.b16 %v143, %v127
  %v176 = vpack.c.b16 %v144, %v128
  %v177 = vpack.c.b16 %v145, %v129
  %v178 = vpack.c.b16 %v146, %v130
  %v179 = vpack.c.b16 %v147, %v131
  %v180 = vpack.c.b16 %v148, %v132
  %v181 = vpack.c.b16 %v149, %v133
  %vm214 = vcmask 261120
  %v216 = vsel %vm214, %v53, 0
  %218 = vmatprep.subr.bf16.mxu0 0
  %219 = vmatpush1.bf16.msra.mxu0 0
  %220 = vmatprep.subr.bf16.mxu0 0
  %221 = vmatpush1.bf16.msra.mxu0 0
  %222 = vmatprep.subr.bf16.mxu0 0
  %223 = vmatpush1.bf16.msra.mxu0 0
  %224 = vmatprep.subr.bf16.mxu0 0
  %225 = vmatpush1.bf16.msra.mxu0 0
  %226 = vmatprep.subr.bf16.mxu0 0
  %227 = vmatpush1.bf16.msra.mxu0 0
  %228 = vmatprep.subr.bf16.mxu0 0
  %229 = vmatpush1.bf16.msra.mxu0 0
  %230 = vmatprep.subr.bf16.mxu0 %v167
  %231 = vmatpush1.bf16.msra.mxu0 %v166
  %232 = vmatprep.subr.bf16.mxu0 %v151
  %233 = vmatpush1.bf16.msra.mxu0 %v150
  %234 = vmatprep.subr.bf16.mxu0 0
  %235 = vmatpush2.bf16.msra.mxu0 0
  %236 = vmatprep.subr.bf16.mxu0 0
  %237 = vmatpush2.bf16.msra.mxu0 0
  %238 = vmatprep.subr.bf16.mxu0 0
  %239 = vmatpush2.bf16.msra.mxu0 0
  %240 = vmatprep.subr.bf16.mxu0 0
  %241 = vmatpush2.bf16.msra.mxu0 0
  %242 = vmatprep.subr.bf16.mxu0 0
  %243 = vmatpush2.bf16.msra.mxu0 0
  %244 = vmatprep.subr.bf16.mxu0 0
  %245 = vmatpush2.bf16.msra.mxu0 0
  %246 = vmatprep.subr.bf16.mxu0 0
  %247 = vmatpush2.bf16.msra.mxu0 0
  %248 = vmatprep.subr.bf16.mxu0 0
  %249 = vmatpush2.bf16.msra.mxu0 0
  %250 = vmatprep.mubr.bf16.mxu0 0
  %251 = vmatmul.mubr.bf16.gmra.mxu0 %v216
  %v252 = vpop.f32.mrf.mxu0
  %v253 = vadd.f32 0.0, %v252
  %v254 = vpop.f32.mrf.mxu0
  %v255 = vadd.f32 0.0, %v254
  %v256 = vpop.f32.mrf.mxu0
  %v257 = vadd.f32 0.0, %v256
  %v258 = vpop.f32.mrf.mxu0
  %v259 = vadd.f32 0.0, %v258
  %260 = vdwg.mxu0
  %261 = vmatprep.subr.bf16.mxu0 0
  %262 = vmatpush1.bf16.msra.mxu0 0
  %263 = vmatprep.subr.bf16.mxu0 0
  %264 = vmatpush1.bf16.msra.mxu0 0
  %265 = vmatprep.subr.bf16.mxu0 0
  %266 = vmatpush1.bf16.msra.mxu0 0
  %267 = vmatprep.subr.bf16.mxu0 0
  %268 = vmatpush1.bf16.msra.mxu0 0
  %269 = vmatprep.subr.bf16.mxu0 0
  %270 = vmatpush1.bf16.msra.mxu0 0
  %271 = vmatprep.subr.bf16.mxu0 0
  %272 = vmatpush1.bf16.msra.mxu0 0
  %273 = vmatprep.subr.bf16.mxu0 %v169
  %274 = vmatpush1.bf16.msra.mxu0 %v168
  %275 = vmatprep.subr.bf16.mxu0 %v153
  %276 = vmatpush1.bf16.msra.mxu0 %v152
  %277 = vmatprep.subr.bf16.mxu0 0
  %278 = vmatpush2.bf16.msra.mxu0 0
  %279 = vmatprep.subr.bf16.mxu0 0
  %280 = vmatpush2.bf16.msra.mxu0 0
  %281 = vmatprep.subr.bf16.mxu0 0
  %282 = vmatpush2.bf16.msra.mxu0 0
  %283 = vmatprep.subr.bf16.mxu0 0
  %284 = vmatpush2.bf16.msra.mxu0 0
  %285 = vmatprep.subr.bf16.mxu0 0
  %286 = vmatpush2.bf16.msra.mxu0 0
  %287 = vmatprep.subr.bf16.mxu0 0
  %288 = vmatpush2.bf16.msra.mxu0 0
  %289 = vmatprep.subr.bf16.mxu0 0
  %290 = vmatpush2.bf16.msra.mxu0 0
  %291 = vmatprep.subr.bf16.mxu0 0
  %292 = vmatpush2.bf16.msra.mxu0 0
  %293 = vmatprep.mubr.bf16.mxu0 0
  %294 = vmatmul.mubr.bf16.gmra.mxu0 %v216
  %v295 = vpop.f32.mrf.mxu0
  %v296 = vadd.f32 0.0, %v295
  %v297 = vpop.f32.mrf.mxu0
  %v298 = vadd.f32 0.0, %v297
  %v299 = vpop.f32.mrf.mxu0
  %v300 = vadd.f32 0.0, %v299
  %v301 = vpop.f32.mrf.mxu0
  %v302 = vadd.f32 0.0, %v301
  %303 = vdwg.mxu0
  %304 = vmatprep.subr.bf16.mxu0 0
  %305 = vmatpush1.bf16.msra.mxu0 0
  %306 = vmatprep.subr.bf16.mxu0 0
  %307 = vmatpush1.bf16.msra.mxu0 0
  %308 = vmatprep.subr.bf16.mxu0 0
  %309 = vmatpush1.bf16.msra.mxu0 0
  %310 = vmatprep.subr.bf16.mxu0 0
  %311 = vmatpush1.bf16.msra.mxu0 0
  %312 = vmatprep.subr.bf16.mxu0 0
  %313 = vmatpush1.bf16.msra.mxu0 0
  %314 = vmatprep.subr.bf16.mxu0 0
  %315 = vmatpush1.bf16.msra.mxu0 0
  %316 = vmatprep.subr.bf16.mxu0 %v171
  %317 = vmatpush1.bf16.msra.mxu0 %v170
  %318 = vmatprep.subr.bf16.mxu0 %v155
  %319 = vmatpush1.bf16.msra.mxu0 %v154
  %320 = vmatprep.subr.bf16.mxu0 0
  %321 = vmatpush2.bf16.msra.mxu0 0
  %322 = vmatprep.subr.bf16.mxu0 0
  %323 = vmatpush2.bf16.msra.mxu0 0
  %324 = vmatprep.subr.bf16.mxu0 0
  %325 = vmatpush2.bf16.msra.mxu0 0
  %326 = vmatprep.subr.bf16.mxu0 0
  %327 = vmatpush2.bf16.msra.mxu0 0
  %328 = vmatprep.subr.bf16.mxu0 0
  %329 = vmatpush2.bf16.msra.mxu0 0
  %330 = vmatprep.subr.bf16.mxu0 0
  %331 = vmatpush2.bf16.msra.mxu0 0
  %332 = vmatprep.subr.bf16.mxu0 0
  %333 = vmatpush2.bf16.msra.mxu0 0
  %334 = vmatprep.subr.bf16.mxu0 0
  %335 = vmatpush2.bf16.msra.mxu0 0
  %336 = vmatprep.mubr.bf16.mxu0 0
  %337 = vmatmul.mubr.bf16.gmra.mxu0 %v216
  %v338 = vpop.f32.mrf.mxu0
  %v339 = vadd.f32 0.0, %v338
  %v340 = vpop.f32.mrf.mxu0
  %v341 = vadd.f32 0.0, %v340
  %v342 = vpop.f32.mrf.mxu0
  %v343 = vadd.f32 0.0, %v342
  %v344 = vpop.f32.mrf.mxu0
  %v345 = vadd.f32 0.0, %v344
  %346 = vdwg.mxu0
  %347 = vmatprep.subr.bf16.mxu0 0
  %348 = vmatpush1.bf16.msra.mxu0 0
  %349 = vmatprep.subr.bf16.mxu0 0
  %350 = vmatpush1.bf16.msra.mxu0 0
  %351 = vmatprep.subr.bf16.mxu0 0
  %352 = vmatpush1.bf16.msra.mxu0 0
  %353 = vmatprep.subr.bf16.mxu0 0
  %354 = vmatpush1.bf16.msra.mxu0 0
  %355 = vmatprep.subr.bf16.mxu0 0
  %356 = vmatpush1.bf16.msra.mxu0 0
  %357 = vmatprep.subr.bf16.mxu0 0
  %358 = vmatpush1.bf16.msra.mxu0 0
  %359 = vmatprep.subr.bf16.mxu0 %v173
  %360 = vmatpush1.bf16.msra.mxu0 %v172
  %361 = vmatprep.subr.bf16.mxu0 %v157
  %362 = vmatpush1.bf16.msra.mxu0 %v156
  %363 = vmatprep.subr.bf16.mxu0 0
  %364 = vmatpush2.bf16.msra.mxu0 0
  %365 = vmatprep.subr.bf16.mxu0 0
  %366 = vmatpush2.bf16.msra.mxu0 0
  %367 = vmatprep.subr.bf16.mxu0 0
  %368 = vmatpush2.bf16.msra.mxu0 0
  %369 = vmatprep.subr.bf16.mxu0 0
  %370 = vmatpush2.bf16.msra.mxu0 0
  %371 = vmatprep.subr.bf16.mxu0 0
  %372 = vmatpush2.bf16.msra.mxu0 0
  %373 = vmatprep.subr.bf16.mxu0 0
  %374 = vmatpush2.bf16.msra.mxu0 0
  %375 = vmatprep.subr.bf16.mxu0 0
  %376 = vmatpush2.bf16.msra.mxu0 0
  %377 = vmatprep.subr.bf16.mxu0 0
  %378 = vmatpush2.bf16.msra.mxu0 0
  %379 = vmatprep.mubr.bf16.mxu0 0
  %380 = vmatmul.mubr.bf16.gmra.mxu0 %v216
  %v381 = vpop.f32.mrf.mxu0
  %v382 = vadd.f32 0.0, %v381
  %v383 = vpop.f32.mrf.mxu0
  %v384 = vadd.f32 0.0, %v383
  %v385 = vpop.f32.mrf.mxu0
  %v386 = vadd.f32 0.0, %v385
  %v387 = vpop.f32.mrf.mxu0
  %v388 = vadd.f32 0.0, %v387
  %389 = vdwg.mxu0
  %390 = vmatprep.subr.bf16.mxu0 0
  %391 = vmatpush1.bf16.msra.mxu0 0
  %392 = vmatprep.subr.bf16.mxu0 0
  %393 = vmatpush1.bf16.msra.mxu0 0
  %394 = vmatprep.subr.bf16.mxu0 0
  %395 = vmatpush1.bf16.msra.mxu0 0
  %396 = vmatprep.subr.bf16.mxu0 0
  %397 = vmatpush1.bf16.msra.mxu0 0
  %398 = vmatprep.subr.bf16.mxu0 0
  %399 = vmatpush1.bf16.msra.mxu0 0
  %400 = vmatprep.subr.bf16.mxu0 0
  %401 = vmatpush1.bf16.msra.mxu0 0
  %402 = vmatprep.subr.bf16.mxu0 %v175
  %403 = vmatpush1.bf16.msra.mxu0 %v174
  %404 = vmatprep.subr.bf16.mxu0 %v159
  %405 = vmatpush1.bf16.msra.mxu0 %v158
  %406 = vmatprep.subr.bf16.mxu0 0
  %407 = vmatpush2.bf16.msra.mxu0 0
  %408 = vmatprep.subr.bf16.mxu0 0
  %409 = vmatpush2.bf16.msra.mxu0 0
  %410 = vmatprep.subr.bf16.mxu0 0
  %411 = vmatpush2.bf16.msra.mxu0 0
  %412 = vmatprep.subr.bf16.mxu0 0
  %413 = vmatpush2.bf16.msra.mxu0 0
  %414 = vmatprep.subr.bf16.mxu0 0
  %415 = vmatpush2.bf16.msra.mxu0 0
  %416 = vmatprep.subr.bf16.mxu0 0
  %417 = vmatpush2.bf16.msra.mxu0 0
  %418 = vmatprep.subr.bf16.mxu0 0
  %419 = vmatpush2.bf16.msra.mxu0 0
  %420 = vmatprep.subr.bf16.mxu0 0
  %421 = vmatpush2.bf16.msra.mxu0 0
  %422 = vmatprep.mubr.bf16.mxu0 0
  %423 = vmatmul.mubr.bf16.gmra.mxu0 %v216
  %v424 = vpop.f32.mrf.mxu0
  %v425 = vadd.f32 0.0, %v424
  %v426 = vpop.f32.mrf.mxu0
  %v427 = vadd.f32 0.0, %v426
  %v428 = vpop.f32.mrf.mxu0
  %v429 = vadd.f32 0.0, %v428
  %v430 = vpop.f32.mrf.mxu0
  %v431 = vadd.f32 0.0, %v430
  %432 = vdwg.mxu0
  %433 = vmatprep.subr.bf16.mxu0 0
  %434 = vmatpush1.bf16.msra.mxu0 0
  %435 = vmatprep.subr.bf16.mxu0 0
  %436 = vmatpush1.bf16.msra.mxu0 0
  %437 = vmatprep.subr.bf16.mxu0 0
  %438 = vmatpush1.bf16.msra.mxu0 0
  %439 = vmatprep.subr.bf16.mxu0 0
  %440 = vmatpush1.bf16.msra.mxu0 0
  %441 = vmatprep.subr.bf16.mxu0 0
  %442 = vmatpush1.bf16.msra.mxu0 0
  %443 = vmatprep.subr.bf16.mxu0 0
  %444 = vmatpush1.bf16.msra.mxu0 0
  %445 = vmatprep.subr.bf16.mxu0 %v177
  %446 = vmatpush1.bf16.msra.mxu0 %v176
  %447 = vmatprep.subr.bf16.mxu0 %v161
  %448 = vmatpush1.bf16.msra.mxu0 %v160
  %449 = vmatprep.subr.bf16.mxu0 0
  %450 = vmatpush2.bf16.msra.mxu0 0
  %451 = vmatprep.subr.bf16.mxu0 0
  %452 = vmatpush2.bf16.msra.mxu0 0
  %453 = vmatprep.subr.bf16.mxu0 0
  %454 = vmatpush2.bf16.msra.mxu0 0
  %455 = vmatprep.subr.bf16.mxu0 0
  %456 = vmatpush2.bf16.msra.mxu0 0
  %457 = vmatprep.subr.bf16.mxu0 0
  %458 = vmatpush2.bf16.msra.mxu0 0
  %459 = vmatprep.subr.bf16.mxu0 0
  %460 = vmatpush2.bf16.msra.mxu0 0
  %461 = vmatprep.subr.bf16.mxu0 0
  %462 = vmatpush2.bf16.msra.mxu0 0
  %463 = vmatprep.subr.bf16.mxu0 0
  %464 = vmatpush2.bf16.msra.mxu0 0
  %465 = vmatprep.mubr.bf16.mxu0 0
  %466 = vmatmul.mubr.bf16.gmra.mxu0 %v216
  %v467 = vpop.f32.mrf.mxu0
  %v468 = vadd.f32 0.0, %v467
  %v469 = vpop.f32.mrf.mxu0
  %v470 = vadd.f32 0.0, %v469
  %v471 = vpop.f32.mrf.mxu0
  %v472 = vadd.f32 0.0, %v471
  %v473 = vpop.f32.mrf.mxu0
  %v474 = vadd.f32 0.0, %v473
  %475 = vdwg.mxu0
  %476 = vmatprep.subr.bf16.mxu0 0
  %477 = vmatpush1.bf16.msra.mxu0 0
  %478 = vmatprep.subr.bf16.mxu0 0
  %479 = vmatpush1.bf16.msra.mxu0 0
  %480 = vmatprep.subr.bf16.mxu0 0
  %481 = vmatpush1.bf16.msra.mxu0 0
  %482 = vmatprep.subr.bf16.mxu0 0
  %483 = vmatpush1.bf16.msra.mxu0 0
  %484 = vmatprep.subr.bf16.mxu0 0
  %485 = vmatpush1.bf16.msra.mxu0 0
  %486 = vmatprep.subr.bf16.mxu0 0
  %487 = vmatpush1.bf16.msra.mxu0 0
  %488 = vmatprep.subr.bf16.mxu0 %v179
  %489 = vmatpush1.bf16.msra.mxu0 %v178
  %490 = vmatprep.subr.bf16.mxu0 %v163
  %491 = vmatpush1.bf16.msra.mxu0 %v162
  %492 = vmatprep.subr.bf16.mxu0 0
  %493 = vmatpush2.bf16.msra.mxu0 0
  %494 = vmatprep.subr.bf16.mxu0 0
  %495 = vmatpush2.bf16.msra.mxu0 0
  %496 = vmatprep.subr.bf16.mxu0 0
  %497 = vmatpush2.bf16.msra.mxu0 0
  %498 = vmatprep.subr.bf16.mxu0 0
  %499 = vmatpush2.bf16.msra.mxu0 0
  %500 = vmatprep.subr.bf16.mxu0 0
  %501 = vmatpush2.bf16.msra.mxu0 0
  %502 = vmatprep.subr.bf16.mxu0 0
  %503 = vmatpush2.bf16.msra.mxu0 0
  %504 = vmatprep.subr.bf16.mxu0 0
  %505 = vmatpush2.bf16.msra.mxu0 0
  %506 = vmatprep.subr.bf16.mxu0 0
  %507 = vmatpush2.bf16.msra.mxu0 0
  %508 = vmatprep.mubr.bf16.mxu0 0
  %509 = vmatmul.mubr.bf16.gmra.mxu0 %v216
  %v510 = vpop.f32.mrf.mxu0
  %v511 = vadd.f32 0.0, %v510
  %v512 = vpop.f32.mrf.mxu0
  %v513 = vadd.f32 0.0, %v512
  %v514 = vpop.f32.mrf.mxu0
  %v515 = vadd.f32 0.0, %v514
  %v516 = vpop.f32.mrf.mxu0
  %v517 = vadd.f32 0.0, %v516
  %518 = vdwg.mxu0
  %519 = vmatprep.subr.bf16.mxu0 0
  %520 = vmatpush1.bf16.msra.mxu0 0
  %521 = vmatprep.subr.bf16.mxu0 0
  %522 = vmatpush1.bf16.msra.mxu0 0
  %523 = vmatprep.subr.bf16.mxu0 0
  %524 = vmatpush1.bf16.msra.mxu0 0
  %525 = vmatprep.subr.bf16.mxu0 0
  %526 = vmatpush1.bf16.msra.mxu0 0
  %527 = vmatprep.subr.bf16.mxu0 0
  %528 = vmatpush1.bf16.msra.mxu0 0
  %529 = vmatprep.subr.bf16.mxu0 0
  %530 = vmatpush1.bf16.msra.mxu0 0
  %531 = vmatprep.subr.bf16.mxu0 %v181
  %532 = vmatpush1.bf16.msra.mxu0 %v180
  %533 = vmatprep.subr.bf16.mxu0 %v165
  %534 = vmatpush1.bf16.msra.mxu0 %v164
  %535 = vmatprep.subr.bf16.mxu0 0
  %536 = vmatpush2.bf16.msra.mxu0 0
  %537 = vmatprep.subr.bf16.mxu0 0
  %538 = vmatpush2.bf16.msra.mxu0 0
  %539 = vmatprep.subr.bf16.mxu0 0
  %540 = vmatpush2.bf16.msra.mxu0 0
  %541 = vmatprep.subr.bf16.mxu0 0
  %542 = vmatpush2.bf16.msra.mxu0 0
  %543 = vmatprep.subr.bf16.mxu0 0
  %544 = vmatpush2.bf16.msra.mxu0 0
  %545 = vmatprep.subr.bf16.mxu0 0
  %546 = vmatpush2.bf16.msra.mxu0 0
  %547 = vmatprep.subr.bf16.mxu0 0
  %548 = vmatpush2.bf16.msra.mxu0 0
  %549 = vmatprep.subr.bf16.mxu0 0
  %550 = vmatpush2.bf16.msra.mxu0 0
  %551 = vmatprep.mubr.bf16.mxu0 0
  %552 = vmatmul.mubr.bf16.gmra.mxu0 %v216
  %v553 = vpop.f32.mrf.mxu0
  %v554 = vadd.f32 0.0, %v553
  %v555 = vpop.f32.mrf.mxu0
  %v556 = vadd.f32 0.0, %v555
  %v557 = vpop.f32.mrf.mxu0
  %v558 = vadd.f32 0.0, %v557
  %v559 = vpop.f32.mrf.mxu0
  %v560 = vadd.f32 0.0, %v559
  %561 = vdwg.mxu0
  %v562 = vmax.f32 %v253, %v339
  %v563 = vmax.f32 %v255, %v341
  %v564 = vmax.f32 %v296, %v382
  %v565 = vmax.f32 %v298, %v384
  %v566 = vmax.f32 %v257, %v343
  %v567 = vmax.f32 %v259, %v345
  %v568 = vmax.f32 %v300, %v386
  %v569 = vmax.f32 %v302, %v388
  %v570 = vmax.f32 %v562, %v425
  %v571 = vmax.f32 %v563, %v427
  %v572 = vmax.f32 %v564, %v468
  %v573 = vmax.f32 %v565, %v470
  %v574 = vmax.f32 %v566, %v429
  %v575 = vmax.f32 %v567, %v431
  %v576 = vmax.f32 %v568, %v472
  %v577 = vmax.f32 %v569, %v474
  %v578 = vmax.f32 %v570, %v511
  %v579 = vmax.f32 %v571, %v513
  %v580 = vmax.f32 %v572, %v554
  %v581 = vmax.f32 %v573, %v556
  %v582 = vmax.f32 %v574, %v515
  %v583 = vmax.f32 %v575, %v517
  %v584 = vmax.f32 %v576, %v558
  %v585 = vmax.f32 %v577, %v560
  %v586 = vld [vmem:[%s2] sm:$0xff]
  %v587 = vld [vmem:[%s2 + $0x8] sm:$0xff]
  %589 = vset.pattern.permute.xlu0 0
  %590 = vperm.xlu0 %589, %v586
  %v591 = vpop.permute.xlu0 %590
  %594 = vset.pattern.permute.xlu0 0
  %595 = vperm.xlu0 %594, %v587
  %v596 = vpop.permute.xlu0 %595
  %v598 = vadd.f32 %v578, %v591
  %v599 = vadd.f32 %v579, %v591
  %v600 = vadd.f32 %v580, %v591
  %v601 = vadd.f32 %v581, %v591
  %v602 = vadd.f32 %v582, %v596
  %v603 = vadd.f32 %v583, %v596
  %v604 = vadd.f32 %v584, %v596
  %v605 = vadd.f32 %v585, %v596
  %v606 = vmax.f32 %v598, 0.0
  %v607 = vmax.f32 %v599, 0.0
  %v608 = vmax.f32 %v600, 0.0
  %v609 = vmax.f32 %v601, 0.0
  %v610 = vmax.f32 %v602, 0.0
  %v611 = vmax.f32 %v603, 0.0
  %v612 = vmax.f32 %v604, 0.0
  %v613 = vmax.f32 %v605, 0.0
  %v614 = vpack.c.bf16 %v610, %v606
  %v615 = vpack.c.bf16 %v611, %v607
  %v616 = vpack.c.bf16 %v612, %v608
  %v617 = vpack.c.bf16 %v613, %v609
  %v622 = vunpack.c.l.b16 %v614
  %v623 = vunpack.c.l.b16 %v615
  %v624 = vunpack.c.l.b16 %v616
  %v625 = vunpack.c.l.b16 %v617
  %v626 = vunpack.c.h.b16 %v614
  %v627 = vunpack.c.h.b16 %v615
  %v628 = vunpack.c.h.b16 %v616
  %v629 = vunpack.c.h.b16 %v617
  %v630 = vpack.c.b16 %v623, %v622
  %v631 = vpack.c.b16 %v625, %v624
  %v632 = vpack.c.b16 %v627, %v626
  %v633 = vpack.c.b16 %v629, %v628
  %638 = vst [vmem:[%s3] sm:$0xff] %v630
  %639 = vst [vmem:[%s3 + $0x8] sm:$0xff] %v631
  %640 = vst [vmem:[%s3 + $0x10] sm:$0xff] %v632
  %641 = vst [vmem:[%s3 + $0x18] sm:$0xff] %v633
  // Predicated region
  $region14: #{cnn_forward.3} parent=0 // pred_check
    _
  $region15: #{cnn_forward.3} parent=0 // pred_check_branch
    %643 = sbr.rel (0) target = $region17
  $region16: #{cnn_forward.3} parent=0 // pred_region
    _
  $region17: #{cnn_forward.3} parent=0 // pred_fallthru
    _
  // Predicated region
  $region18: #{cnn_forward.3} parent=0 // pred_check
    _
  $region19: #{cnn_forward.3} parent=0 // pred_check_branch
    %645 = sbr.rel (0) target = $region21
  $region20: #{cnn_forward.3} parent=0 // pred_region
    _
  $region21: #{cnn_forward.3} parent=0 // pred_fallthru
    _

// kernel: cnn_forward.4
$region0: #{cnn_forward.4}
  #allocation0 [shape = 'u32[]', space=smem, size = 0x4, offset = 0x4, fixed_abs, tag = 'smem constant byte address 0x4 - core index']
  #allocation1 [shape = 'u32[144,128]{1,0:T(1,128)}', space=vmem, size = 0x12000, scoped, tag = 'internal scratch']
  %s0 = inlined_call_operand.vmem [shape: bf16[400,512], index: 0, kind: input, shape index: {}]
  %s1 = inlined_call_operand.vmem [shape: bf16[32,400], index: 1, kind: input, shape index: {}]
  %s2 = inlined_call_operand.vmem [shape: f32[32,1], index: 2, kind: input, shape index: {}]
  %s3 = inlined_call_operand.vmem [shape: f32[32,128], index: 3, kind: output, shape index: {}]
  %s4 = sld [smem:[#allocation0]]
  $region22: #{cnn_forward.4} parent=0
    _
  %s6 = ssub.s32 1, %s4
  %s7 = scalar_select 0, %s6, %s4
  // Predicated region
  $region2: #{cnn_forward.4} parent=0 // pred_check
    _
  $region3: #{cnn_forward.4} parent=0 // pred_check_branch
    %9 = sbr.rel (0) target = $region5
  $region4: #{cnn_forward.4} parent=0 // pred_region
    _
  $region5: #{cnn_forward.4} parent=0 // pred_fallthru
    _
  // Predicated region
  $region6: #{cnn_forward.4} parent=0 // pred_check
    _
  $region7: #{cnn_forward.4} parent=0 // pred_check_branch
    %11 = sbr.rel (0) target = $region9
  $region8: #{cnn_forward.4} parent=0 // pred_region
    _
  $region9: #{cnn_forward.4} parent=0 // pred_fallthru
    _
  // Predicated region
  $region10: #{cnn_forward.4} parent=0 // pred_check
    _
  $region11: #{cnn_forward.4} parent=0 // pred_check_branch
    %13 = sbr.rel (0) target = $region13
  $region12: #{cnn_forward.4} parent=0 // pred_region
    _
  $region13: #{cnn_forward.4} parent=0 // pred_fallthru
    _
  %v15 = vld [vmem:[%s1] sm:$0xff]
  %v16 = vld [vmem:[%s1 + $0x8] sm:$0xff]
  %v17 = vld [vmem:[%s1 + $0x10] sm:$0xff]
  %v18 = vld [vmem:[%s1 + $0x18] sm:$0xff]
  %v19 = vld [vmem:[%s1 + $0x20] sm:$0xff]
  %v20 = vld [vmem:[%s1 + $0x28] sm:$0xff]
  %v21 = vld [vmem:[%s1 + $0x30] sm:$0xff]
  %v22 = vld [vmem:[%s1 + $0x38] sm:$0xff]
  %v23 = vld [vmem:[%s0] sm:$0xff]
  %v24 = vld [vmem:[%s0 + $0x8] sm:$0xff]
  %v25 = vld [vmem:[%s0 + $0x10] sm:$0xff]
  %v26 = vld [vmem:[%s0 + $0x18] sm:$0xff]
  %v27 = vld [vmem:[%s0 + $0x20] sm:$0xff]
  %v28 = vld [vmem:[%s0 + $0x28] sm:$0xff]
  %v29 = vld [vmem:[%s0 + $0x30] sm:$0xff]
  %v30 = vld [vmem:[%s0 + $0x38] sm:$0xff]
  %v31 = vld [vmem:[%s0 + $0x40] sm:$0xff]
  %v32 = vld [vmem:[%s0 + $0x48] sm:$0xff]
  %v33 = vld [vmem:[%s0 + $0x50] sm:$0xff]
  %v34 = vld [vmem:[%s0 + $0x58] sm:$0xff]
  %v35 = vld [vmem:[%s0 + $0x60] sm:$0xff]
  %v36 = vld [vmem:[%s0 + $0x68] sm:$0xff]
  %v37 = vld [vmem:[%s0 + $0x70] sm:$0xff]
  %v38 = vld [vmem:[%s0 + $0x78] sm:$0xff]
  %v39 = vld [vmem:[%s0 + $0x80] sm:$0xff]
  %v40 = vld [vmem:[%s0 + $0x88] sm:$0xff]
  %v41 = vld [vmem:[%s0 + $0x90] sm:$0xff]
  %v42 = vld [vmem:[%s0 + $0x98] sm:$0xff]
  %v43 = vld [vmem:[%s0 + $0xa0] sm:$0xff]
  %v44 = vld [vmem:[%s0 + $0xa8] sm:$0xff]
  %v45 = vld [vmem:[%s0 + $0xb0] sm:$0xff]
  %v46 = vld [vmem:[%s0 + $0xb8] sm:$0xff]
  %v47 = vld [vmem:[%s0 + $0xc0] sm:$0xff]
  %v48 = vld [vmem:[%s0 + $0xc8] sm:$0xff]
  %v49 = vld [vmem:[%s0 + $0xd0] sm:$0xff]
  %v50 = vld [vmem:[%s0 + $0xd8] sm:$0xff]
  %v51 = vld [vmem:[%s0 + $0xe0] sm:$0xff]
  %v52 = vld [vmem:[%s0 + $0xe8] sm:$0xff]
  %v53 = vld [vmem:[%s0 + $0xf0] sm:$0xff]
  %v54 = vld [vmem:[%s0 + $0xf8] sm:$0xff]
  %v55 = vld [vmem:[%s0 + $0x100] sm:$0xff]
  %v56 = vld [vmem:[%s0 + $0x108] sm:$0xff]
  %v57 = vld [vmem:[%s0 + $0x110] sm:$0xff]
  %v58 = vld [vmem:[%s0 + $0x118] sm:$0xff]
  %v59 = vld [vmem:[%s0 + $0x120] sm:$0xff]
  %v60 = vld [vmem:[%s0 + $0x128] sm:$0xff]
  %v61 = vld [vmem:[%s0 + $0x130] sm:$0xff]
  %v62 = vld [vmem:[%s0 + $0x138] sm:$0xff]
  %v63 = vld [vmem:[%s0 + $0x140] sm:$0xff]
  %v64 = vld [vmem:[%s0 + $0x148] sm:$0xff]
  %v65 = vld [vmem:[%s0 + $0x150] sm:$0xff]
  %v66 = vld [vmem:[%s0 + $0x158] sm:$0xff]
  %v67 = vld [vmem:[%s0 + $0x160] sm:$0xff]
  %v68 = vld [vmem:[%s0 + $0x168] sm:$0xff]
  %v69 = vld [vmem:[%s0 + $0x170] sm:$0xff]
  %v70 = vld [vmem:[%s0 + $0x178] sm:$0xff]
  %v71 = vld [vmem:[%s0 + $0x180] sm:$0xff]
  %v72 = vld [vmem:[%s0 + $0x188] sm:$0xff]
  %v73 = vld [vmem:[%s0 + $0x190] sm:$0xff]
  %v74 = vld [vmem:[%s0 + $0x198] sm:$0xff]
  %v75 = vld [vmem:[%s0 + $0x1a0] sm:$0xff]
  %v76 = vld [vmem:[%s0 + $0x1a8] sm:$0xff]
  %v77 = vld [vmem:[%s0 + $0x1b0] sm:$0xff]
  %v78 = vld [vmem:[%s0 + $0x1b8] sm:$0xff]
  %v79 = vld [vmem:[%s0 + $0x1c0] sm:$0xff]
  %v80 = vld [vmem:[%s0 + $0x1c8] sm:$0xff]
  %v81 = vld [vmem:[%s0 + $0x1d0] sm:$0xff]
  %v82 = vld [vmem:[%s0 + $0x1d8] sm:$0xff]
  %v83 = vld [vmem:[%s0 + $0x1e0] sm:$0xff]
  %v84 = vld [vmem:[%s0 + $0x1e8] sm:$0xff]
  %v85 = vld [vmem:[%s0 + $0x1f0] sm:$0xff]
  %v86 = vld [vmem:[%s0 + $0x1f8] sm:$0xff]
  %v87 = vld [vmem:[%s0 + $0x200] sm:$0xff]
  %v88 = vld [vmem:[%s0 + $0x208] sm:$0xff]
  %v89 = vld [vmem:[%s0 + $0x210] sm:$0xff]
  %v90 = vld [vmem:[%s0 + $0x218] sm:$0xff]
  %v91 = vld [vmem:[%s0 + $0x220] sm:$0xff]
  %v92 = vld [vmem:[%s0 + $0x228] sm:$0xff]
  %v93 = vld [vmem:[%s0 + $0x230] sm:$0xff]
  %v94 = vld [vmem:[%s0 + $0x238] sm:$0xff]
  %v95 = vld [vmem:[%s0 + $0x240] sm:$0xff]
  %v96 = vld [vmem:[%s0 + $0x248] sm:$0xff]
  %v97 = vld [vmem:[%s0 + $0x250] sm:$0xff]
  %v98 = vld [vmem:[%s0 + $0x258] sm:$0xff]
  %v99 = vld [vmem:[%s0 + $0x260] sm:$0xff]
  %v100 = vld [vmem:[%s0 + $0x268] sm:$0xff]
  %v101 = vld [vmem:[%s0 + $0x270] sm:$0xff]
  %v102 = vld [vmem:[%s0 + $0x278] sm:$0xff]
  %v103 = vld [vmem:[%s0 + $0x280] sm:$0xff]
  %v104 = vld [vmem:[%s0 + $0x288] sm:$0xff]
  %v105 = vld [vmem:[%s0 + $0x290] sm:$0xff]
  %v106 = vld [vmem:[%s0 + $0x298] sm:$0xff]
  %v107 = vld [vmem:[%s0 + $0x2a0] sm:$0xff]
  %v108 = vld [vmem:[%s0 + $0x2a8] sm:$0xff]
  %v109 = vld [vmem:[%s0 + $0x2b0] sm:$0xff]
  %v110 = vld [vmem:[%s0 + $0x2b8] sm:$0xff]
  %v111 = vld [vmem:[%s0 + $0x2c0] sm:$0xff]
  %v112 = vld [vmem:[%s0 + $0x2c8] sm:$0xff]
  %v113 = vld [vmem:[%s0 + $0x2d0] sm:$0xff]
  %v114 = vld [vmem:[%s0 + $0x2d8] sm:$0xff]
  %v115 = vld [vmem:[%s0 + $0x2e0] sm:$0xff]
  %v116 = vld [vmem:[%s0 + $0x2e8] sm:$0xff]
  %v117 = vld [vmem:[%s0 + $0x2f0] sm:$0xff]
  %v118 = vld [vmem:[%s0 + $0x2f8] sm:$0xff]
  %v119 = vld [vmem:[%s0 + $0x300] sm:$0xff]
  %v120 = vld [vmem:[%s0 + $0x308] sm:$0xff]
  %v121 = vld [vmem:[%s0 + $0x310] sm:$0xff]
  %v122 = vld [vmem:[%s0 + $0x318] sm:$0xff]
  %v131 = vunpack.c.l.b16 %v15
  %v132 = vunpack.c.h.b16 %v15
  %v133 = vunpack.c.l.b16 %v16
  %v134 = vunpack.c.h.b16 %v16
  %v135 = vunpack.c.l.b16 %v17
  %v136 = vunpack.c.h.b16 %v17
  %v137 = vunpack.c.l.b16 %v18
  %v138 = vunpack.c.h.b16 %v18
  %v139 = vunpack.c.l.b16 %v19
  %v140 = vunpack.c.h.b16 %v19
  %v141 = vunpack.c.l.b16 %v20
  %v142 = vunpack.c.h.b16 %v20
  %v143 = vunpack.c.l.b16 %v21
  %v144 = vunpack.c.h.b16 %v21
  %v145 = vunpack.c.l.b16 %v22
  %v146 = vunpack.c.h.b16 %v22
  %v147 = vpack.c.b16 %v135, %v131
  %v148 = vpack.c.b16 %v136, %v132
  %v149 = vpack.c.b16 %v137, %v133
  %v150 = vpack.c.b16 %v138, %v134
  %v151 = vpack.c.b16 %v143, %v139
  %v152 = vpack.c.b16 %v144, %v140
  %v153 = vpack.c.b16 %v145, %v141
  %v154 = vpack.c.b16 %v146, %v142
  %v261 = vunpack.c.l.b16 %v23
  %v262 = vunpack.c.h.b16 %v23
  %v263 = vunpack.c.l.b16 %v24
  %v264 = vunpack.c.h.b16 %v24
  %v265 = vunpack.c.l.b16 %v25
  %v266 = vunpack.c.h.b16 %v25
  %v267 = vunpack.c.l.b16 %v26
  %v268 = vunpack.c.h.b16 %v26
  %v269 = vunpack.c.l.b16 %v27
  %v270 = vunpack.c.h.b16 %v27
  %v271 = vunpack.c.l.b16 %v28
  %v272 = vunpack.c.h.b16 %v28
  %v273 = vunpack.c.l.b16 %v29
  %v274 = vunpack.c.h.b16 %v29
  %v275 = vunpack.c.l.b16 %v30
  %v276 = vunpack.c.h.b16 %v30
  %v277 = vunpack.c.l.b16 %v31
  %v278 = vunpack.c.h.b16 %v31
  %v279 = vunpack.c.l.b16 %v32
  %v280 = vunpack.c.h.b16 %v32
  %v281 = vunpack.c.l.b16 %v33
  %v282 = vunpack.c.h.b16 %v33
  %v283 = vunpack.c.l.b16 %v34
  %v284 = vunpack.c.h.b16 %v34
  %v285 = vunpack.c.l.b16 %v35
  %v286 = vunpack.c.h.b16 %v35
  %v287 = vunpack.c.l.b16 %v36
  %v288 = vunpack.c.h.b16 %v36
  %v289 = vunpack.c.l.b16 %v37
  %v290 = vunpack.c.h.b16 %v37
  %v291 = vunpack.c.l.b16 %v38
  %v292 = vunpack.c.h.b16 %v38
  %v293 = vunpack.c.l.b16 %v39
  %v294 = vunpack.c.h.b16 %v39
  %v295 = vunpack.c.l.b16 %v40
  %v296 = vunpack.c.h.b16 %v40
  %v297 = vunpack.c.l.b16 %v41
  %v298 = vunpack.c.h.b16 %v41
  %v299 = vunpack.c.l.b16 %v42
  %v300 = vunpack.c.h.b16 %v42
  %v301 = vunpack.c.l.b16 %v43
  %v302 = vunpack.c.h.b16 %v43
  %v303 = vunpack.c.l.b16 %v44
  %v304 = vunpack.c.h.b16 %v44
  %v305 = vunpack.c.l.b16 %v45
  %v306 = vunpack.c.h.b16 %v45
  %v307 = vunpack.c.l.b16 %v46
  %v308 = vunpack.c.h.b16 %v46
  %v309 = vunpack.c.l.b16 %v47
  %v310 = vunpack.c.h.b16 %v47
  %v311 = vunpack.c.l.b16 %v48
  %v312 = vunpack.c.h.b16 %v48
  %v313 = vunpack.c.l.b16 %v49
  %v314 = vunpack.c.h.b16 %v49
  %v315 = vunpack.c.l.b16 %v50
  %v316 = vunpack.c.h.b16 %v50
  %v317 = vunpack.c.l.b16 %v51
  %v318 = vunpack.c.h.b16 %v51
  %v319 = vunpack.c.l.b16 %v52
  %v320 = vunpack.c.h.b16 %v52
  %v321 = vunpack.c.l.b16 %v53
  %v322 = vunpack.c.h.b16 %v53
  %v323 = vunpack.c.l.b16 %v54
  %v324 = vunpack.c.h.b16 %v54
  %v325 = vunpack.c.l.b16 %v55
  %v326 = vunpack.c.h.b16 %v55
  %v327 = vunpack.c.l.b16 %v56
  %v328 = vunpack.c.h.b16 %v56
  %v329 = vunpack.c.l.b16 %v57
  %v330 = vunpack.c.h.b16 %v57
  %v331 = vunpack.c.l.b16 %v58
  %v332 = vunpack.c.h.b16 %v58
  %v333 = vunpack.c.l.b16 %v59
  %v334 = vunpack.c.h.b16 %v59
  %v335 = vunpack.c.l.b16 %v60
  %v336 = vunpack.c.h.b16 %v60
  %v337 = vunpack.c.l.b16 %v61
  %v338 = vunpack.c.h.b16 %v61
  %v339 = vunpack.c.l.b16 %v62
  %v340 = vunpack.c.h.b16 %v62
  %v341 = vunpack.c.l.b16 %v63
  %v342 = vunpack.c.h.b16 %v63
  %v343 = vunpack.c.l.b16 %v64
  %v344 = vunpack.c.h.b16 %v64
  %v345 = vunpack.c.l.b16 %v65
  %v346 = vunpack.c.h.b16 %v65
  %v347 = vunpack.c.l.b16 %v66
  %v348 = vunpack.c.h.b16 %v66
  %v349 = vunpack.c.l.b16 %v67
  %v350 = vunpack.c.h.b16 %v67
  %v351 = vunpack.c.l.b16 %v68
  %v352 = vunpack.c.h.b16 %v68
  %v353 = vunpack.c.l.b16 %v69
  %v354 = vunpack.c.h.b16 %v69
  %v355 = vunpack.c.l.b16 %v70
  %v356 = vunpack.c.h.b16 %v70
  %v357 = vunpack.c.l.b16 %v71
  %v358 = vunpack.c.h.b16 %v71
  %v359 = vunpack.c.l.b16 %v72
  %v360 = vunpack.c.h.b16 %v72
  %v361 = vunpack.c.l.b16 %v73
  %v362 = vunpack.c.h.b16 %v73
  %v363 = vunpack.c.l.b16 %v74
  %v364 = vunpack.c.h.b16 %v74
  %v365 = vunpack.c.l.b16 %v75
  %v366 = vunpack.c.h.b16 %v75
  %v367 = vunpack.c.l.b16 %v76
  %v368 = vunpack.c.h.b16 %v76
  %v369 = vunpack.c.l.b16 %v77
  %v370 = vunpack.c.h.b16 %v77
  %v371 = vunpack.c.l.b16 %v78
  %v372 = vunpack.c.h.b16 %v78
  %v373 = vunpack.c.l.b16 %v79
  %v374 = vunpack.c.h.b16 %v79
  %v375 = vunpack.c.l.b16 %v80
  %v376 = vunpack.c.h.b16 %v80
  %v377 = vunpack.c.l.b16 %v81
  %v378 = vunpack.c.h.b16 %v81
  %v379 = vunpack.c.l.b16 %v82
  %v380 = vunpack.c.h.b16 %v82
  %v381 = vunpack.c.l.b16 %v83
  %v382 = vunpack.c.h.b16 %v83
  %v383 = vunpack.c.l.b16 %v84
  %v384 = vunpack.c.h.b16 %v84
  %v385 = vunpack.c.l.b16 %v85
  %v386 = vunpack.c.h.b16 %v85
  %v387 = vunpack.c.l.b16 %v86
  %v388 = vunpack.c.h.b16 %v86
  %v389 = vunpack.c.l.b16 %v87
  %v390 = vunpack.c.h.b16 %v87
  %v391 = vunpack.c.l.b16 %v88
  %v392 = vunpack.c.h.b16 %v88
  %v393 = vunpack.c.l.b16 %v89
  %v394 = vunpack.c.h.b16 %v89
  %v395 = vunpack.c.l.b16 %v90
  %v396 = vunpack.c.h.b16 %v90
  %v397 = vunpack.c.l.b16 %v91
  %v398 = vunpack.c.h.b16 %v91
  %v399 = vunpack.c.l.b16 %v92
  %v400 = vunpack.c.h.b16 %v92
  %v401 = vunpack.c.l.b16 %v93
  %v402 = vunpack.c.h.b16 %v93
  %v403 = vunpack.c.l.b16 %v94
  %v404 = vunpack.c.h.b16 %v94
  %v405 = vunpack.c.l.b16 %v95
  %v406 = vunpack.c.h.b16 %v95
  %v407 = vunpack.c.l.b16 %v96
  %v408 = vunpack.c.h.b16 %v96
  %v409 = vunpack.c.l.b16 %v97
  %v410 = vunpack.c.h.b16 %v97
  %v411 = vunpack.c.l.b16 %v98
  %v412 = vunpack.c.h.b16 %v98
  %v413 = vunpack.c.l.b16 %v99
  %v414 = vunpack.c.h.b16 %v99
  %v415 = vunpack.c.l.b16 %v100
  %v416 = vunpack.c.h.b16 %v100
  %v417 = vunpack.c.l.b16 %v101
  %v418 = vunpack.c.h.b16 %v101
  %v419 = vunpack.c.l.b16 %v102
  %v420 = vunpack.c.h.b16 %v102
  %v421 = vunpack.c.l.b16 %v103
  %v422 = vunpack.c.h.b16 %v103
  %v423 = vunpack.c.l.b16 %v104
  %v424 = vunpack.c.h.b16 %v104
  %v425 = vunpack.c.l.b16 %v105
  %v426 = vunpack.c.h.b16 %v105
  %v427 = vunpack.c.l.b16 %v106
  %v428 = vunpack.c.h.b16 %v106
  %v429 = vunpack.c.l.b16 %v107
  %v430 = vunpack.c.h.b16 %v107
  %v431 = vunpack.c.l.b16 %v108
  %v432 = vunpack.c.h.b16 %v108
  %v433 = vunpack.c.l.b16 %v109
  %v434 = vunpack.c.h.b16 %v109
  %v435 = vunpack.c.l.b16 %v110
  %v436 = vunpack.c.h.b16 %v110
  %v437 = vunpack.c.l.b16 %v111
  %v438 = vunpack.c.h.b16 %v111
  %v439 = vunpack.c.l.b16 %v112
  %v440 = vunpack.c.h.b16 %v112
  %v441 = vunpack.c.l.b16 %v113
  %v442 = vunpack.c.h.b16 %v113
  %v443 = vunpack.c.l.b16 %v114
  %v444 = vunpack.c.h.b16 %v114
  %v445 = vunpack.c.l.b16 %v115
  %v446 = vunpack.c.h.b16 %v115
  %v447 = vunpack.c.l.b16 %v116
  %v448 = vunpack.c.h.b16 %v116
  %v449 = vunpack.c.l.b16 %v117
  %v450 = vunpack.c.h.b16 %v117
  %v451 = vunpack.c.l.b16 %v118
  %v452 = vunpack.c.h.b16 %v118
  %v453 = vunpack.c.l.b16 %v119
  %v454 = vunpack.c.h.b16 %v119
  %v455 = vunpack.c.l.b16 %v120
  %v456 = vunpack.c.h.b16 %v120
  %v457 = vunpack.c.l.b16 %v121
  %v458 = vunpack.c.h.b16 %v121
  %v459 = vunpack.c.l.b16 %v122
  %v460 = vunpack.c.h.b16 %v122
  %v461 = vpack.c.b16 %v265, %v261
  %v462 = vpack.c.b16 %v266, %v262
  %v463 = vpack.c.b16 %v267, %v263
  %v464 = vpack.c.b16 %v268, %v264
  %v465 = vpack.c.b16 %v273, %v269
  %v466 = vpack.c.b16 %v274, %v270
  %v467 = vpack.c.b16 %v275, %v271
  %v468 = vpack.c.b16 %v276, %v272
  %v469 = vpack.c.b16 %v281, %v277
  %v470 = vpack.c.b16 %v282, %v278
  %v471 = vpack.c.b16 %v283, %v279
  %v472 = vpack.c.b16 %v284, %v280
  %v473 = vpack.c.b16 %v289, %v285
  %v474 = vpack.c.b16 %v290, %v286
  %v475 = vpack.c.b16 %v291, %v287
  %v476 = vpack.c.b16 %v292, %v288
  %v477 = vpack.c.b16 %v297, %v293
  %v478 = vpack.c.b16 %v298, %v294
  %v479 = vpack.c.b16 %v299, %v295
  %v480 = vpack.c.b16 %v300, %v296
  %v481 = vpack.c.b16 %v305, %v301
  %v482 = vpack.c.b16 %v306, %v302
  %v483 = vpack.c.b16 %v307, %v303
  %v484 = vpack.c.b16 %v308, %v304
  %v485 = vpack.c.b16 %v313, %v309
  %v486 = vpack.c.b16 %v314, %v310
  %v487 = vpack.c.b16 %v315, %v311
  %v488 = vpack.c.b16 %v316, %v312
  %v489 = vpack.c.b16 %v321, %v317
  %v490 = vpack.c.b16 %v322, %v318
  %v491 = vpack.c.b16 %v323, %v319
  %v492 = vpack.c.b16 %v324, %v320
  %v493 = vpack.c.b16 %v329, %v325
  %v494 = vpack.c.b16 %v330, %v326
  %v495 = vpack.c.b16 %v331, %v327
  %v496 = vpack.c.b16 %v332, %v328
  %v497 = vpack.c.b16 %v337, %v333
  %v498 = vpack.c.b16 %v338, %v334
  %v499 = vpack.c.b16 %v339, %v335
  %v500 = vpack.c.b16 %v340, %v336
  %v501 = vpack.c.b16 %v345, %v341
  %v502 = vpack.c.b16 %v346, %v342
  %v503 = vpack.c.b16 %v347, %v343
  %v504 = vpack.c.b16 %v348, %v344
  %v505 = vpack.c.b16 %v353, %v349
  %v506 = vpack.c.b16 %v354, %v350
  %v507 = vpack.c.b16 %v355, %v351
  %v508 = vpack.c.b16 %v356, %v352
  %v509 = vpack.c.b16 %v361, %v357
  %v510 = vpack.c.b16 %v362, %v358
  %v511 = vpack.c.b16 %v363, %v359
  %v512 = vpack.c.b16 %v364, %v360
  %v513 = vpack.c.b16 %v369, %v365
  %v514 = vpack.c.b16 %v370, %v366
  %v515 = vpack.c.b16 %v371, %v367
  %v516 = vpack.c.b16 %v372, %v368
  %v517 = vpack.c.b16 %v377, %v373
  %v518 = vpack.c.b16 %v378, %v374
  %v519 = vpack.c.b16 %v379, %v375
  %v520 = vpack.c.b16 %v380, %v376
  %v521 = vpack.c.b16 %v385, %v381
  %v522 = vpack.c.b16 %v386, %v382
  %v523 = vpack.c.b16 %v387, %v383
  %v524 = vpack.c.b16 %v388, %v384
  %v525 = vpack.c.b16 %v393, %v389
  %v526 = vpack.c.b16 %v394, %v390
  %v527 = vpack.c.b16 %v395, %v391
  %v528 = vpack.c.b16 %v396, %v392
  %v529 = vpack.c.b16 %v401, %v397
  %v530 = vpack.c.b16 %v402, %v398
  %v531 = vpack.c.b16 %v403, %v399
  %v532 = vpack.c.b16 %v404, %v400
  %v533 = vpack.c.b16 %v409, %v405
  %v534 = vpack.c.b16 %v410, %v406
  %v535 = vpack.c.b16 %v411, %v407
  %v536 = vpack.c.b16 %v412, %v408
  %v537 = vpack.c.b16 %v417, %v413
  %v538 = vpack.c.b16 %v418, %v414
  %v539 = vpack.c.b16 %v419, %v415
  %v540 = vpack.c.b16 %v420, %v416
  %v541 = vpack.c.b16 %v425, %v421
  %v542 = vpack.c.b16 %v426, %v422
  %v543 = vpack.c.b16 %v427, %v423
  %v544 = vpack.c.b16 %v428, %v424
  %v545 = vpack.c.b16 %v433, %v429
  %v546 = vpack.c.b16 %v434, %v430
  %v547 = vpack.c.b16 %v435, %v431
  %v548 = vpack.c.b16 %v436, %v432
  %v549 = vpack.c.b16 %v441, %v437
  %v550 = vpack.c.b16 %v442, %v438
  %v551 = vpack.c.b16 %v443, %v439
  %v552 = vpack.c.b16 %v444, %v440
  %v553 = vpack.c.b16 %v449, %v445
  %v554 = vpack.c.b16 %v450, %v446
  %v555 = vpack.c.b16 %v451, %v447
  %v556 = vpack.c.b16 %v452, %v448
  %v557 = vpack.c.b16 %v457, %v453
  %v558 = vpack.c.b16 %v458, %v454
  %v559 = vpack.c.b16 %v459, %v455
  %v560 = vpack.c.b16 %v460, %v456
  %vm661 = vcmask 130048
  %v663 = vsel %vm661, %v150, 0
  %v666 = vsel %vm661, %v154, 0
  %668 = vmatprep.subr.bf16.mxu0 %v490
  %669 = vmatpush1.bf16.msra.mxu0 %v489
  %670 = vmatprep.subr.bf16.mxu0 %v486
  %671 = vmatpush1.bf16.msra.mxu0 %v485
  %672 = vmatprep.subr.bf16.mxu0 %v482
  %673 = vmatpush1.bf16.msra.mxu0 %v481
  %674 = vmatprep.subr.bf16.mxu0 %v478
  %675 = vmatpush1.bf16.msra.mxu0 %v477
  %676 = vmatprep.subr.bf16.mxu0 %v474
  %677 = vmatpush1.bf16.msra.mxu0 %v473
  %678 = vmatprep.subr.bf16.mxu0 %v470
  %679 = vmatpush1.bf16.msra.mxu0 %v469
  %680 = vmatprep.subr.bf16.mxu0 %v466
  %681 = vmatpush1.bf16.msra.mxu0 %v465
  %682 = vmatprep.subr.bf16.mxu0 %v462
  %683 = vmatpush1.bf16.msra.mxu0 %v461
  %684 = vmatprep.subr.bf16.mxu0 %v522
  %685 = vmatpush2.bf16.msra.mxu0 %v521
  %686 = vmatprep.subr.bf16.mxu0 %v518
  %687 = vmatpush2.bf16.msra.mxu0 %v517
  %688 = vmatprep.subr.bf16.mxu0 %v514
  %689 = vmatpush2.bf16.msra.mxu0 %v513
  %690 = vmatprep.subr.bf16.mxu0 %v510
  %691 = vmatpush2.bf16.msra.mxu0 %v509
  %692 = vmatprep.subr.bf16.mxu0 %v506
  %693 = vmatpush2.bf16.msra.mxu0 %v505
  %694 = vmatprep.subr.bf16.mxu0 %v502
  %695 = vmatpush2.bf16.msra.mxu0 %v501
  %696 = vmatprep.subr.bf16.mxu0 %v498
  %697 = vmatpush2.bf16.msra.mxu0 %v497
  %698 = vmatprep.subr.bf16.mxu0 %v494
  %699 = vmatpush2.bf16.msra.mxu0 %v493
  %700 = vmatprep.mubr.bf16.mxu0 %v148
  %701 = vmatmul.mubr.bf16.gmra.mxu0 %v147
  %v702 = vpop.f32.mrf.mxu0
  %v703 = vadd.f32 0.0, %v702
  %v704 = vpop.f32.mrf.mxu0
  %v705 = vadd.f32 0.0, %v704
  %v706 = vpop.f32.mrf.mxu0
  %v707 = vadd.f32 0.0, %v706
  %v708 = vpop.f32.mrf.mxu0
  %v709 = vadd.f32 0.0, %v708
  %710 = vmatprep.mubr.bf16.mxu0 %v152
  %711 = vmatmul.mubr.bf16.gmra.mxu0 %v151
  %v712 = vpop.f32.mrf.mxu0
  %v713 = vadd.f32 0.0, %v712
  %v714 = vpop.f32.mrf.mxu0
  %v715 = vadd.f32 0.0, %v714
  %v716 = vpop.f32.mrf.mxu0
  %v717 = vadd.f32 0.0, %v716
  %v718 = vpop.f32.mrf.mxu0
  %v719 = vadd.f32 0.0, %v718
  %720 = vdwg.mxu0
  %721 = vmatprep.subr.bf16.mxu0 %v554
  %722 = vmatpush1.bf16.msra.mxu0 %v553
  %723 = vmatprep.subr.bf16.mxu0 %v550
  %724 = vmatpush1.bf16.msra.mxu0 %v549
  %725 = vmatprep.subr.bf16.mxu0 %v546
  %726 = vmatpush1.bf16.msra.mxu0 %v545
  %727 = vmatprep.subr.bf16.mxu0 %v542
  %728 = vmatpush1.bf16.msra.mxu0 %v541
  %729 = vmatprep.subr.bf16.mxu0 %v538
  %730 = vmatpush1.bf16.msra.mxu0 %v537
  %731 = vmatprep.subr.bf16.mxu0 %v534
  %732 = vmatpush1.bf16.msra.mxu0 %v533
  %733 = vmatprep.subr.bf16.mxu0 %v530
  %734 = vmatpush1.bf16.msra.mxu0 %v529
  %735 = vmatprep.subr.bf16.mxu0 %v526
  %736 = vmatpush1.bf16.msra.mxu0 %v525
  %737 = vmatprep.subr.bf16.mxu0 0
  %738 = vmatpush2.bf16.msra.mxu0 0
  %739 = vmatprep.subr.bf16.mxu0 0
  %740 = vmatpush2.bf16.msra.mxu0 0
  %741 = vmatprep.subr.bf16.mxu0 0
  %742 = vmatpush2.bf16.msra.mxu0 0
  %743 = vmatprep.subr.bf16.mxu0 0
  %744 = vmatpush2.bf16.msra.mxu0 0
  %745 = vmatprep.subr.bf16.mxu0 0
  %746 = vmatpush2.bf16.msra.mxu0 0
  %747 = vmatprep.subr.bf16.mxu0 0
  %748 = vmatpush2.bf16.msra.mxu0 0
  %749 = vmatprep.subr.bf16.mxu0 0
  %750 = vmatpush2.bf16.msra.mxu0 0
  %751 = vmatprep.subr.bf16.mxu0 %v558
  %752 = vmatpush2.bf16.msra.mxu0 %v557
  %753 = vmatprep.mubr.bf16.mxu0 %v663
  %754 = vmatmul.mubr.bf16.gmra.mxu0 %v149
  %v755 = vpop.f32.mrf.mxu0
  %v756 = vadd.f32 %v703, %v755
  %v757 = vpop.f32.mrf.mxu0
  %v758 = vadd.f32 %v705, %v757
  %v759 = vpop.f32.mrf.mxu0
  %v760 = vadd.f32 %v707, %v759
  %v761 = vpop.f32.mrf.mxu0
  %v762 = vadd.f32 %v709, %v761
  %763 = vmatprep.mubr.bf16.mxu0 %v666
  %764 = vmatmul.mubr.bf16.gmra.mxu0 %v153
  %v765 = vpop.f32.mrf.mxu0
  %v766 = vadd.f32 %v713, %v765
  %v767 = vpop.f32.mrf.mxu0
  %v768 = vadd.f32 %v715, %v767
  %v769 = vpop.f32.mrf.mxu0
  %v770 = vadd.f32 %v717, %v769
  %v771 = vpop.f32.mrf.mxu0
  %v772 = vadd.f32 %v719, %v771
  %773 = vdwg.mxu0
  %774 = vmatprep.subr.bf16.mxu0 %v492
  %775 = vmatpush1.bf16.msra.mxu0 %v491
  %776 = vmatprep.subr.bf16.mxu0 %v488
  %777 = vmatpush1.bf16.msra.mxu0 %v487
  %778 = vmatprep.subr.bf16.mxu0 %v484
  %779 = vmatpush1.bf16.msra.mxu0 %v483
  %780 = vmatprep.subr.bf16.mxu0 %v480
  %781 = vmatpush1.bf16.msra.mxu0 %v479
  %782 = vmatprep.subr.bf16.mxu0 %v476
  %783 = vmatpush1.bf16.msra.mxu0 %v475
  %784 = vmatprep.subr.bf16.mxu0 %v472
  %785 = vmatpush1.bf16.msra.mxu0 %v471
  %786 = vmatprep.subr.bf16.mxu0 %v468
  %787 = vmatpush1.bf16.msra.mxu0 %v467
  %788 = vmatprep.subr.bf16.mxu0 %v464
  %789 = vmatpush1.bf16.msra.mxu0 %v463
  %790 = vmatprep.subr.bf16.mxu0 %v524
  %791 = vmatpush2.bf16.msra.mxu0 %v523
  %792 = vmatprep.subr.bf16.mxu0 %v520
  %793 = vmatpush2.bf16.msra.mxu0 %v519
  %794 = vmatprep.subr.bf16.mxu0 %v516
  %795 = vmatpush2.bf16.msra.mxu0 %v515
  %796 = vmatprep.subr.bf16.mxu0 %v512
  %797 = vmatpush2.bf16.msra.mxu0 %v511
  %798 = vmatprep.subr.bf16.mxu0 %v508
  %799 = vmatpush2.bf16.msra.mxu0 %v507
  %800 = vmatprep.subr.bf16.mxu0 %v504
  %801 = vmatpush2.bf16.msra.mxu0 %v503
  %802 = vmatprep.subr.bf16.mxu0 %v500
  %803 = vmatpush2.bf16.msra.mxu0 %v499
  %804 = vmatprep.subr.bf16.mxu0 %v496
  %805 = vmatpush2.bf16.msra.mxu0 %v495
  %806 = vmatprep.mubr.bf16.mxu0 %v148
  %807 = vmatmul.mubr.bf16.gmra.mxu0 %v147
  %v808 = vpop.f32.mrf.mxu0
  %v809 = vadd.f32 0.0, %v808
  %v810 = vpop.f32.mrf.mxu0
  %v811 = vadd.f32 0.0, %v810
  %v812 = vpop.f32.mrf.mxu0
  %v813 = vadd.f32 0.0, %v812
  %v814 = vpop.f32.mrf.mxu0
  %v815 = vadd.f32 0.0, %v814
  %816 = vmatprep.mubr.bf16.mxu0 %v152
  %817 = vmatmul.mubr.bf16.gmra.mxu0 %v151
  %v818 = vpop.f32.mrf.mxu0
  %v819 = vadd.f32 0.0, %v818
  %v820 = vpop.f32.mrf.mxu0
  %v821 = vadd.f32 0.0, %v820
  %v822 = vpop.f32.mrf.mxu0
  %v823 = vadd.f32 0.0, %v822
  %v824 = vpop.f32.mrf.mxu0
  %v825 = vadd.f32 0.0, %v824
  %826 = vdwg.mxu0
  %827 = vmatprep.subr.bf16.mxu0 %v556
  %828 = vmatpush1.bf16.msra.mxu0 %v555
  %829 = vmatprep.subr.bf16.mxu0 %v552
  %830 = vmatpush1.bf16.msra.mxu0 %v551
  %831 = vmatprep.subr.bf16.mxu0 %v548
  %832 = vmatpush1.bf16.msra.mxu0 %v547
  %833 = vmatprep.subr.bf16.mxu0 %v544
  %834 = vmatpush1.bf16.msra.mxu0 %v543
  %835 = vmatprep.subr.bf16.mxu0 %v540
  %836 = vmatpush1.bf16.msra.mxu0 %v539
  %837 = vmatprep.subr.bf16.mxu0 %v536
  %838 = vmatpush1.bf16.msra.mxu0 %v535
  %839 = vmatprep.subr.bf16.mxu0 %v532
  %840 = vmatpush1.bf16.msra.mxu0 %v531
  %841 = vmatprep.subr.bf16.mxu0 %v528
  %842 = vmatpush1.bf16.msra.mxu0 %v527
  %843 = vmatprep.subr.bf16.mxu0 0
  %844 = vmatpush2.bf16.msra.mxu0 0
  %845 = vmatprep.subr.bf16.mxu0 0
  %846 = vmatpush2.bf16.msra.mxu0 0
  %847 = vmatprep.subr.bf16.mxu0 0
  %848 = vmatpush2.bf16.msra.mxu0 0
  %849 = vmatprep.subr.bf16.mxu0 0
  %850 = vmatpush2.bf16.msra.mxu0 0
  %851 = vmatprep.subr.bf16.mxu0 0
  %852 = vmatpush2.bf16.msra.mxu0 0
  %853 = vmatprep.subr.bf16.mxu0 0
  %854 = vmatpush2.bf16.msra.mxu0 0
  %855 = vmatprep.subr.bf16.mxu0 0
  %856 = vmatpush2.bf16.msra.mxu0 0
  %857 = vmatprep.subr.bf16.mxu0 %v560
  %858 = vmatpush2.bf16.msra.mxu0 %v559
  %859 = vmatprep.mubr.bf16.mxu0 %v663
  %860 = vmatmul.mubr.bf16.gmra.mxu0 %v149
  %v861 = vpop.f32.mrf.mxu0
  %v862 = vadd.f32 %v809, %v861
  %v863 = vpop.f32.mrf.mxu0
  %v864 = vadd.f32 %v811, %v863
  %v865 = vpop.f32.mrf.mxu0
  %v866 = vadd.f32 %v813, %v865
  %v867 = vpop.f32.mrf.mxu0
  %v868 = vadd.f32 %v815, %v867
  %869 = vmatprep.mubr.bf16.mxu0 %v666
  %870 = vmatmul.mubr.bf16.gmra.mxu0 %v153
  %v871 = vpop.f32.mrf.mxu0
  %v872 = vadd.f32 %v819, %v871
  %v873 = vpop.f32.mrf.mxu0
  %v874 = vadd.f32 %v821, %v873
  %v875 = vpop.f32.mrf.mxu0
  %v876 = vadd.f32 %v823, %v875
  %v877 = vpop.f32.mrf.mxu0
  %v878 = vadd.f32 %v825, %v877
  %879 = vdwg.mxu0
  %v880 = vmax.f32 %v756, %v758
  %v881 = vmax.f32 %v760, %v762
  %v882 = vmax.f32 %v766, %v768
  %v883 = vmax.f32 %v770, %v772
  %v884 = vmax.f32 %v880, %v862
  %v885 = vmax.f32 %v881, %v866
  %v886 = vmax.f32 %v882, %v872
  %v887 = vmax.f32 %v883, %v876
  %v888 = vmax.f32 %v884, %v864
  %v889 = vmax.f32 %v885, %v868
  %v890 = vmax.f32 %v886, %v874
  %v891 = vmax.f32 %v887, %v878
  %v892 = vld [vmem:[%s2] sm:$0xff]
  %v893 = vld [vmem:[%s2 + $0x8] sm:$0xff]
  %v894 = vld [vmem:[%s2 + $0x10] sm:$0xff]
  %v895 = vld [vmem:[%s2 + $0x18] sm:$0xff]
  %897 = vset.pattern.permute.xlu0 0
  %898 = vperm.xlu0 %897, %v892
  %v899 = vpop.permute.xlu0 %898
  %902 = vset.pattern.permute.xlu0 0
  %903 = vperm.xlu0 %902, %v893
  %v904 = vpop.permute.xlu0 %903
  %907 = vset.pattern.permute.xlu0 0
  %908 = vperm.xlu0 %907, %v894
  %v909 = vpop.permute.xlu0 %908
  %912 = vset.pattern.permute.xlu0 0
  %913 = vperm.xlu0 %912, %v895
  %v914 = vpop.permute.xlu0 %913
  %v916 = vadd.f32 %v888, %v899
  %v917 = vadd.f32 %v889, %v904
  %v918 = vadd.f32 %v890, %v909
  %v919 = vadd.f32 %v891, %v914
  %v920 = vmax.f32 %v916, 0.0
  %v921 = vmax.f32 %v917, 0.0
  %v922 = vmax.f32 %v918, 0.0
  %v923 = vmax.f32 %v919, 0.0
  %924 = vst [vmem:[%s3] sm:$0xff] %v920
  %925 = vst [vmem:[%s3 + $0x8] sm:$0xff] %v921
  %926 = vst [vmem:[%s3 + $0x10] sm:$0xff] %v922
  %927 = vst [vmem:[%s3 + $0x18] sm:$0xff] %v923
  // Predicated region
  $region14: #{cnn_forward.4} parent=0 // pred_check
    _
  $region15: #{cnn_forward.4} parent=0 // pred_check_branch
    %929 = sbr.rel (0) target = $region17
  $region16: #{cnn_forward.4} parent=0 // pred_region
    _
  $region17: #{cnn_forward.4} parent=0 // pred_fallthru
    _
  // Predicated region
  $region18: #{cnn_forward.4} parent=0 // pred_check
    _
  $region19: #{cnn_forward.4} parent=0 // pred_check_branch
    %931 = sbr.rel (0) target = $region21
  $region20: #{cnn_forward.4} parent=0 // pred_region
    _
  $region21: #{cnn_forward.4} parent=0 // pred_fallthru
    _

// kernel: cnn_forward.5
$region0: #{cnn_forward.5}
  #allocation0 [shape = 'u32[]', space=smem, size = 0x4, offset = 0x4, fixed_abs, tag = 'smem constant byte address 0x4 - core index']
  #allocation1 [shape = 'u32[144,128]{1,0:T(1,128)}', space=vmem, size = 0x12000, scoped, tag = 'internal scratch']
  %s0 = inlined_call_operand.vmem [shape: bf16[8,1568], index: 0, kind: input, shape index: {}]
  %s1 = inlined_call_operand.vmem [shape: bf16[1568,128], index: 1, kind: input, shape index: {}]
  %s2 = inlined_call_operand.vmem [shape: f32[1,128], index: 2, kind: input, shape index: {}]
  %s3 = inlined_call_operand.vmem [shape: f32[8,128], index: 3, kind: output, shape index: {}]
  %s4 = sld [smem:[#allocation0]]
  $region22: #{cnn_forward.5} parent=0
    _
  %s6 = ssub.s32 1, %s4
  %s7 = scalar_select 0, %s6, %s4
  // Predicated region
  $region2: #{cnn_forward.5} parent=0 // pred_check
    _
  $region3: #{cnn_forward.5} parent=0 // pred_check_branch
    %9 = sbr.rel (0) target = $region5
  $region4: #{cnn_forward.5} parent=0 // pred_region
    _
  $region5: #{cnn_forward.5} parent=0 // pred_fallthru
    _
  // Predicated region
  $region6: #{cnn_forward.5} parent=0 // pred_check
    _
  $region7: #{cnn_forward.5} parent=0 // pred_check_branch
    %11 = sbr.rel (0) target = $region9
  $region8: #{cnn_forward.5} parent=0 // pred_region
    _
  $region9: #{cnn_forward.5} parent=0 // pred_fallthru
    _
  // Predicated region
  $region10: #{cnn_forward.5} parent=0 // pred_check
    _
  $region11: #{cnn_forward.5} parent=0 // pred_check_branch
    %13 = sbr.rel (0) target = $region13
  $region12: #{cnn_forward.5} parent=0 // pred_region
    _
  $region13: #{cnn_forward.5} parent=0 // pred_fallthru
    _
  %v15 = vld [vmem:[%s0] sm:$0xff]
  %v16 = vld [vmem:[%s0 + $0x8] sm:$0xff]
  %v17 = vld [vmem:[%s0 + $0x10] sm:$0xff]
  %v18 = vld [vmem:[%s0 + $0x18] sm:$0xff]
  %v19 = vld [vmem:[%s0 + $0x20] sm:$0xff]
  %v20 = vld [vmem:[%s0 + $0x28] sm:$0xff]
  %v21 = vld [vmem:[%s0 + $0x30] sm:$0xf]
  %v22 = vld [vmem:[%s1] sm:$0xf]
  %v23 = vld [vmem:[%s1 + $0x4] sm:$0xf]
  %v24 = vld [vmem:[%s1 + $0x8] sm:$0xf]
  %v25 = vld [vmem:[%s1 + $0xc] sm:$0xf]
  %v26 = vld [vmem:[%s1 + $0x10] sm:$0xf]
  %v27 = vld [vmem:[%s1 + $0x14] sm:$0xf]
  %v28 = vld [vmem:[%s1 + $0x18] sm:$0xf]
  %v29 = vld [vmem:[%s1 + $0x1c] sm:$0xf]
  %v30 = vld [vmem:[%s1 + $0x20] sm:$0xf]
  %v31 = vld [vmem:[%s1 + $0x24] sm:$0xf]
  %v32 = vld [vmem:[%s1 + $0x28] sm:$0xf]
  %v33 = vld [vmem:[%s1 + $0x2c] sm:$0xf]
  %v34 = vld [vmem:[%s1 + $0x30] sm:$0xf]
  %v35 = vld [vmem:[%s1 + $0x34] sm:$0xf]
  %v36 = vld [vmem:[%s1 + $0x38] sm:$0xf]
  %v37 = vld [vmem:[%s1 + $0x3c] sm:$0xf]
  %v38 = vld [vmem:[%s1 + $0x40] sm:$0xf]
  %v39 = vld [vmem:[%s1 + $0x44] sm:$0xf]
  %v40 = vld [vmem:[%s1 + $0x48] sm:$0xf]
  %v41 = vld [vmem:[%s1 + $0x4c] sm:$0xf]
  %v42 = vld [vmem:[%s1 + $0x50] sm:$0xf]
  %v43 = vld [vmem:[%s1 + $0x54] sm:$0xf]
  %v44 = vld [vmem:[%s1 + $0x58] sm:$0xf]
  %v45 = vld [vmem:[%s1 + $0x5c] sm:$0xf]
  %v46 = vld [vmem:[%s1 + $0x60] sm:$0xf]
  %v47 = vld [vmem:[%s1 + $0x64] sm:$0xf]
  %v48 = vld [vmem:[%s1 + $0x68] sm:$0xf]
  %v49 = vld [vmem:[%s1 + $0x6c] sm:$0xf]
  %v50 = vld [vmem:[%s1 + $0x70] sm:$0xf]
  %v51 = vld [vmem:[%s1 + $0x74] sm:$0xf]
  %v52 = vld [vmem:[%s1 + $0x78] sm:$0xf]
  %v53 = vld [vmem:[%s1 + $0x7c] sm:$0xf]
  %v54 = vld [vmem:[%s1 + $0x80] sm:$0xf]
  %v55 = vld [vmem:[%s1 + $0x84] sm:$0xf]
  %v56 = vld [vmem:[%s1 + $0x88] sm:$0xf]
  %v57 = vld [vmem:[%s1 + $0x8c] sm:$0xf]
  %v58 = vld [vmem:[%s1 + $0x90] sm:$0xf]
  %v59 = vld [vmem:[%s1 + $0x94] sm:$0xf]
  %v60 = vld [vmem:[%s1 + $0x98] sm:$0xf]
  %v61 = vld [vmem:[%s1 + $0x9c] sm:$0xf]
  %v62 = vld [vmem:[%s1 + $0xa0] sm:$0xf]
  %v63 = vld [vmem:[%s1 + $0xa4] sm:$0xf]
  %v64 = vld [vmem:[%s1 + $0xa8] sm:$0xf]
  %v65 = vld [vmem:[%s1 + $0xac] sm:$0xf]
  %v66 = vld [vmem:[%s1 + $0xb0] sm:$0xf]
  %v67 = vld [vmem:[%s1 + $0xb4] sm:$0xf]
  %v68 = vld [vmem:[%s1 + $0xb8] sm:$0xf]
  %v69 = vld [vmem:[%s1 + $0xbc] sm:$0xf]
  %v70 = vld [vmem:[%s1 + $0xc0] sm:$0xf]
  %v71 = vld [vmem:[%s1 + $0xc4] sm:$0xf]
  %v72 = vld [vmem:[%s1 + $0xc8] sm:$0xf]
  %v73 = vld [vmem:[%s1 + $0xcc] sm:$0xf]
  %v74 = vld [vmem:[%s1 + $0xd0] sm:$0xf]
  %v75 = vld [vmem:[%s1 + $0xd4] sm:$0xf]
  %v76 = vld [vmem:[%s1 + $0xd8] sm:$0xf]
  %v77 = vld [vmem:[%s1 + $0xdc] sm:$0xf]
  %v78 = vld [vmem:[%s1 + $0xe0] sm:$0xf]
  %v79 = vld [vmem:[%s1 + $0xe4] sm:$0xf]
  %v80 = vld [vmem:[%s1 + $0xe8] sm:$0xf]
  %v81 = vld [vmem:[%s1 + $0xec] sm:$0xf]
  %v82 = vld [vmem:[%s1 + $0xf0] sm:$0xf]
  %v83 = vld [vmem:[%s1 + $0xf4] sm:$0xf]
  %v84 = vld [vmem:[%s1 + $0xf8] sm:$0xf]
  %v85 = vld [vmem:[%s1 + $0xfc] sm:$0xf]
  %v86 = vld [vmem:[%s1 + $0x100] sm:$0xf]
  %v87 = vld [vmem:[%s1 + $0x104] sm:$0xf]
  %v88 = vld [vmem:[%s1 + $0x108] sm:$0xf]
  %v89 = vld [vmem:[%s1 + $0x10c] sm:$0xf]
  %v90 = vld [vmem:[%s1 + $0x110] sm:$0xf]
  %v91 = vld [vmem:[%s1 + $0x114] sm:$0xf]
  %v92 = vld [vmem:[%s1 + $0x118] sm:$0xf]
  %v93 = vld [vmem:[%s1 + $0x11c] sm:$0xf]
  %v94 = vld [vmem:[%s1 + $0x120] sm:$0xf]
  %v95 = vld [vmem:[%s1 + $0x124] sm:$0xf]
  %v96 = vld [vmem:[%s1 + $0x128] sm:$0xf]
  %v97 = vld [vmem:[%s1 + $0x12c] sm:$0xf]
  %v98 = vld [vmem:[%s1 + $0x130] sm:$0xf]
  %v99 = vld [vmem:[%s1 + $0x134] sm:$0xf]
  %v100 = vld [vmem:[%s1 + $0x138] sm:$0xf]
  %v101 = vld [vmem:[%s1 + $0x13c] sm:$0xf]
  %v102 = vld [vmem:[%s1 + $0x140] sm:$0xf]
  %v103 = vld [vmem:[%s1 + $0x144] sm:$0xf]
  %v104 = vld [vmem:[%s1 + $0x148] sm:$0xf]
  %v105 = vld [vmem:[%s1 + $0x14c] sm:$0xf]
  %v106 = vld [vmem:[%s1 + $0x150] sm:$0xf]
  %v107 = vld [vmem:[%s1 + $0x154] sm:$0xf]
  %v108 = vld [vmem:[%s1 + $0x158] sm:$0xf]
  %v109 = vld [vmem:[%s1 + $0x15c] sm:$0xf]
  %v110 = vld [vmem:[%s1 + $0x160] sm:$0xf]
  %v111 = vld [vmem:[%s1 + $0x164] sm:$0xf]
  %v112 = vld [vmem:[%s1 + $0x168] sm:$0xf]
  %v113 = vld [vmem:[%s1 + $0x16c] sm:$0xf]
  %v114 = vld [vmem:[%s1 + $0x170] sm:$0xf]
  %v115 = vld [vmem:[%s1 + $0x174] sm:$0xf]
  %v116 = vld [vmem:[%s1 + $0x178] sm:$0xf]
  %v117 = vld [vmem:[%s1 + $0x17c] sm:$0xf]
  %v118 = vld [vmem:[%s1 + $0x180] sm:$0xf]
  %v119 = vld [vmem:[%s1 + $0x184] sm:$0xf]
  %v120 = vld [vmem:[%s1 + $0x188] sm:$0xf]
  %v121 = vld [vmem:[%s1 + $0x18c] sm:$0xf]
  %v122 = vld [vmem:[%s1 + $0x190] sm:$0xf]
  %v123 = vld [vmem:[%s1 + $0x194] sm:$0xf]
  %v124 = vld [vmem:[%s1 + $0x198] sm:$0xf]
  %v125 = vld [vmem:[%s1 + $0x19c] sm:$0xf]
  %v126 = vld [vmem:[%s1 + $0x1a0] sm:$0xf]
  %v127 = vld [vmem:[%s1 + $0x1a4] sm:$0xf]
  %v128 = vld [vmem:[%s1 + $0x1a8] sm:$0xf]
  %v129 = vld [vmem:[%s1 + $0x1ac] sm:$0xf]
  %v130 = vld [vmem:[%s1 + $0x1b0] sm:$0xf]
  %v131 = vld [vmem:[%s1 + $0x1b4] sm:$0xf]
  %v132 = vld [vmem:[%s1 + $0x1b8] sm:$0xf]
  %v133 = vld [vmem:[%s1 + $0x1bc] sm:$0xf]
  %v134 = vld [vmem:[%s1 + $0x1c0] sm:$0xf]
  %v135 = vld [vmem:[%s1 + $0x1c4] sm:$0xf]
  %v136 = vld [vmem:[%s1 + $0x1c8] sm:$0xf]
  %v137 = vld [vmem:[%s1 + $0x1cc] sm:$0xf]
  %v138 = vld [vmem:[%s1 + $0x1d0] sm:$0xf]
  %v139 = vld [vmem:[%s1 + $0x1d4] sm:$0xf]
  %v140 = vld [vmem:[%s1 + $0x1d8] sm:$0xf]
  %v141 = vld [vmem:[%s1 + $0x1dc] sm:$0xf]
  %v142 = vld [vmem:[%s1 + $0x1e0] sm:$0xf]
  %v143 = vld [vmem:[%s1 + $0x1e4] sm:$0xf]
  %v144 = vld [vmem:[%s1 + $0x1e8] sm:$0xf]
  %v145 = vld [vmem:[%s1 + $0x1ec] sm:$0xf]
  %v146 = vld [vmem:[%s1 + $0x1f0] sm:$0xf]
  %v147 = vld [vmem:[%s1 + $0x1f4] sm:$0xf]
  %v148 = vld [vmem:[%s1 + $0x1f8] sm:$0xf]
  %v149 = vld [vmem:[%s1 + $0x1fc] sm:$0xf]
  %v150 = vld [vmem:[%s1 + $0x200] sm:$0xf]
  %v151 = vld [vmem:[%s1 + $0x204] sm:$0xf]
  %v152 = vld [vmem:[%s1 + $0x208] sm:$0xf]
  %v153 = vld [vmem:[%s1 + $0x20c] sm:$0xf]
  %v154 = vld [vmem:[%s1 + $0x210] sm:$0xf]
  %v155 = vld [vmem:[%s1 + $0x214] sm:$0xf]
  %v156 = vld [vmem:[%s1 + $0x218] sm:$0xf]
  %v157 = vld [vmem:[%s1 + $0x21c] sm:$0xf]
  %v158 = vld [vmem:[%s1 + $0x220] sm:$0xf]
  %v159 = vld [vmem:[%s1 + $0x224] sm:$0xf]
  %v160 = vld [vmem:[%s1 + $0x228] sm:$0xf]
  %v161 = vld [vmem:[%s1 + $0x22c] sm:$0xf]
  %v162 = vld [vmem:[%s1 + $0x230] sm:$0xf]
  %v163 = vld [vmem:[%s1 + $0x234] sm:$0xf]
  %v164 = vld [vmem:[%s1 + $0x238] sm:$0xf]
  %v165 = vld [vmem:[%s1 + $0x23c] sm:$0xf]
  %v166 = vld [vmem:[%s1 + $0x240] sm:$0xf]
  %v167 = vld [vmem:[%s1 + $0x244] sm:$0xf]
  %v168 = vld [vmem:[%s1 + $0x248] sm:$0xf]
  %v169 = vld [vmem:[%s1 + $0x24c] sm:$0xf]
  %v170 = vld [vmem:[%s1 + $0x250] sm:$0xf]
  %v171 = vld [vmem:[%s1 + $0x254] sm:$0xf]
  %v172 = vld [vmem:[%s1 + $0x258] sm:$0xf]
  %v173 = vld [vmem:[%s1 + $0x25c] sm:$0xf]
  %v174 = vld [vmem:[%s1 + $0x260] sm:$0xf]
  %v175 = vld [vmem:[%s1 + $0x264] sm:$0xf]
  %v176 = vld [vmem:[%s1 + $0x268] sm:$0xf]
  %v177 = vld [vmem:[%s1 + $0x26c] sm:$0xf]
  %v178 = vld [vmem:[%s1 + $0x270] sm:$0xf]
  %v179 = vld [vmem:[%s1 + $0x274] sm:$0xf]
  %v180 = vld [vmem:[%s1 + $0x278] sm:$0xf]
  %v181 = vld [vmem:[%s1 + $0x27c] sm:$0xf]
  %v182 = vld [vmem:[%s1 + $0x280] sm:$0xf]
  %v183 = vld [vmem:[%s1 + $0x284] sm:$0xf]
  %v184 = vld [vmem:[%s1 + $0x288] sm:$0xf]
  %v185 = vld [vmem:[%s1 + $0x28c] sm:$0xf]
  %v186 = vld [vmem:[%s1 + $0x290] sm:$0xf]
  %v187 = vld [vmem:[%s1 + $0x294] sm:$0xf]
  %v188 = vld [vmem:[%s1 + $0x298] sm:$0xf]
  %v189 = vld [vmem:[%s1 + $0x29c] sm:$0xf]
  %v190 = vld [vmem:[%s1 + $0x2a0] sm:$0xf]
  %v191 = vld [vmem:[%s1 + $0x2a4] sm:$0xf]
  %v192 = vld [vmem:[%s1 + $0x2a8] sm:$0xf]
  %v193 = vld [vmem:[%s1 + $0x2ac] sm:$0xf]
  %v194 = vld [vmem:[%s1 + $0x2b0] sm:$0xf]
  %v195 = vld [vmem:[%s1 + $0x2b4] sm:$0xf]
  %v196 = vld [vmem:[%s1 + $0x2b8] sm:$0xf]
  %v197 = vld [vmem:[%s1 + $0x2bc] sm:$0xf]
  %v198 = vld [vmem:[%s1 + $0x2c0] sm:$0xf]
  %v199 = vld [vmem:[%s1 + $0x2c4] sm:$0xf]
  %v200 = vld [vmem:[%s1 + $0x2c8] sm:$0xf]
  %v201 = vld [vmem:[%s1 + $0x2cc] sm:$0xf]
  %v202 = vld [vmem:[%s1 + $0x2d0] sm:$0xf]
  %v203 = vld [vmem:[%s1 + $0x2d4] sm:$0xf]
  %v204 = vld [vmem:[%s1 + $0x2d8] sm:$0xf]
  %v205 = vld [vmem:[%s1 + $0x2dc] sm:$0xf]
  %v206 = vld [vmem:[%s1 + $0x2e0] sm:$0xf]
  %v207 = vld [vmem:[%s1 + $0x2e4] sm:$0xf]
  %v208 = vld [vmem:[%s1 + $0x2e8] sm:$0xf]
  %v209 = vld [vmem:[%s1 + $0x2ec] sm:$0xf]
  %v210 = vld [vmem:[%s1 + $0x2f0] sm:$0xf]
  %v211 = vld [vmem:[%s1 + $0x2f4] sm:$0xf]
  %v212 = vld [vmem:[%s1 + $0x2f8] sm:$0xf]
  %v213 = vld [vmem:[%s1 + $0x2fc] sm:$0xf]
  %v214 = vld [vmem:[%s1 + $0x300] sm:$0xf]
  %v215 = vld [vmem:[%s1 + $0x304] sm:$0xf]
  %v216 = vld [vmem:[%s1 + $0x308] sm:$0xf]
  %v217 = vld [vmem:[%s1 + $0x30c] sm:$0xf]
  %v218 = vld [vmem:[%s2] sm:$0x1]
  %v220 = vlaneseq
  %v221 = vshrl.u32 %v220, 7
  %v222 = vsub.s32 0, %v221
  %v223 = vrot.slane %v218, %v222
  %v232 = vunpack.c.l.b16 %v15
  %v233 = vunpack.c.h.b16 %v15
  %v234 = vunpack.c.l.b16 %v16
  %v235 = vunpack.c.h.b16 %v16
  %v236 = vunpack.c.l.b16 %v17
  %v237 = vunpack.c.h.b16 %v17
  %v238 = vunpack.c.l.b16 %v18
  %v239 = vunpack.c.h.b16 %v18
  %v240 = vunpack.c.l.b16 %v19
  %v241 = vunpack.c.h.b16 %v19
  %v242 = vunpack.c.l.b16 %v20
  %v243 = vunpack.c.h.b16 %v20
  %v244 = vunpack.c.l.b16 %v21
  %v245 = vpack.c.b16 %v232, %v232
  %v246 = vpack.c.b16 %v233, %v233
  %v247 = vpack.c.b16 %v234, %v234
  %v248 = vpack.c.b16 %v235, %v235
  %v249 = vpack.c.b16 %v236, %v236
  %v250 = vpack.c.b16 %v237, %v237
  %v251 = vpack.c.b16 %v238, %v238
  %v252 = vpack.c.b16 %v239, %v239
  %v253 = vpack.c.b16 %v240, %v240
  %v254 = vpack.c.b16 %v241, %v241
  %v255 = vpack.c.b16 %v242, %v242
  %v256 = vpack.c.b16 %v243, %v243
  %v257 = vpack.c.b16 %v244, %v244
  %v466 = vunpack.c.l.b16 %v22
  %v467 = vunpack.c.l.b16 %v23
  %v468 = vunpack.c.l.b16 %v24
  %v469 = vunpack.c.l.b16 %v25
  %v470 = vunpack.c.l.b16 %v26
  %v471 = vunpack.c.l.b16 %v27
  %v472 = vunpack.c.l.b16 %v28
  %v473 = vunpack.c.l.b16 %v29
  %v474 = vunpack.c.l.b16 %v30
  %v475 = vunpack.c.l.b16 %v31
  %v476 = vunpack.c.l.b16 %v32
  %v477 = vunpack.c.l.b16 %v33
  %v478 = vunpack.c.l.b16 %v34
  %v479 = vunpack.c.l.b16 %v35
  %v480 = vunpack.c.l.b16 %v36
  %v481 = vunpack.c.l.b16 %v37
  %v482 = vunpack.c.l.b16 %v38
  %v483 = vunpack.c.l.b16 %v39
  %v484 = vunpack.c.l.b16 %v40
  %v485 = vunpack.c.l.b16 %v41
  %v486 = vunpack.c.l.b16 %v42
  %v487 = vunpack.c.l.b16 %v43
  %v488 = vunpack.c.l.b16 %v44
  %v489 = vunpack.c.l.b16 %v45
  %v490 = vunpack.c.l.b16 %v46
  %v491 = vunpack.c.l.b16 %v47
  %v492 = vunpack.c.l.b16 %v48
  %v493 = vunpack.c.l.b16 %v49
  %v494 = vunpack.c.l.b16 %v50
  %v495 = vunpack.c.l.b16 %v51
  %v496 = vunpack.c.l.b16 %v52
  %v497 = vunpack.c.l.b16 %v53
  %v498 = vunpack.c.l.b16 %v54
  %v499 = vunpack.c.l.b16 %v55
  %v500 = vunpack.c.l.b16 %v56
  %v501 = vunpack.c.l.b16 %v57
  %v502 = vunpack.c.l.b16 %v58
  %v503 = vunpack.c.l.b16 %v59
  %v504 = vunpack.c.l.b16 %v60
  %v505 = vunpack.c.l.b16 %v61
  %v506 = vunpack.c.l.b16 %v62
  %v507 = vunpack.c.l.b16 %v63
  %v508 = vunpack.c.l.b16 %v64
  %v509 = vunpack.c.l.b16 %v65
  %v510 = vunpack.c.l.b16 %v66
  %v511 = vunpack.c.l.b16 %v67
  %v512 = vunpack.c.l.b16 %v68
  %v513 = vunpack.c.l.b16 %v69
  %v514 = vunpack.c.l.b16 %v70
  %v515 = vunpack.c.l.b16 %v71
  %v516 = vunpack.c.l.b16 %v72
  %v517 = vunpack.c.l.b16 %v73
  %v518 = vunpack.c.l.b16 %v74
  %v519 = vunpack.c.l.b16 %v75
  %v520 = vunpack.c.l.b16 %v76
  %v521 = vunpack.c.l.b16 %v77
  %v522 = vunpack.c.l.b16 %v78
  %v523 = vunpack.c.l.b16 %v79
  %v524 = vunpack.c.l.b16 %v80
  %v525 = vunpack.c.l.b16 %v81
  %v526 = vunpack.c.l.b16 %v82
  %v527 = vunpack.c.l.b16 %v83
  %v528 = vunpack.c.l.b16 %v84
  %v529 = vunpack.c.l.b16 %v85
  %v530 = vunpack.c.l.b16 %v86
  %v531 = vunpack.c.l.b16 %v87
  %v532 = vunpack.c.l.b16 %v88
  %v533 = vunpack.c.l.b16 %v89
  %v534 = vunpack.c.l.b16 %v90
  %v535 = vunpack.c.l.b16 %v91
  %v536 = vunpack.c.l.b16 %v92
  %v537 = vunpack.c.l.b16 %v93
  %v538 = vunpack.c.l.b16 %v94
  %v539 = vunpack.c.l.b16 %v95
  %v540 = vunpack.c.l.b16 %v96
  %v541 = vunpack.c.l.b16 %v97
  %v542 = vunpack.c.l.b16 %v98
  %v543 = vunpack.c.l.b16 %v99
  %v544 = vunpack.c.l.b16 %v100
  %v545 = vunpack.c.l.b16 %v101
  %v546 = vunpack.c.l.b16 %v102
  %v547 = vunpack.c.l.b16 %v103
  %v548 = vunpack.c.l.b16 %v104
  %v549 = vunpack.c.l.b16 %v105
  %v550 = vunpack.c.l.b16 %v106
  %v551 = vunpack.c.l.b16 %v107
  %v552 = vunpack.c.l.b16 %v108
  %v553 = vunpack.c.l.b16 %v109
  %v554 = vunpack.c.l.b16 %v110
  %v555 = vunpack.c.l.b16 %v111
  %v556 = vunpack.c.l.b16 %v112
  %v557 = vunpack.c.l.b16 %v113
  %v558 = vunpack.c.l.b16 %v114
  %v559 = vunpack.c.l.b16 %v115
  %v560 = vunpack.c.l.b16 %v116
  %v561 = vunpack.c.l.b16 %v117
  %v562 = vunpack.c.l.b16 %v118
  %v563 = vunpack.c.l.b16 %v119
  %v564 = vunpack.c.l.b16 %v120
  %v565 = vunpack.c.l.b16 %v121
  %v566 = vunpack.c.l.b16 %v122
  %v567 = vunpack.c.l.b16 %v123
  %v568 = vunpack.c.l.b16 %v124
  %v569 = vunpack.c.l.b16 %v125
  %v570 = vunpack.c.l.b16 %v126
  %v571 = vunpack.c.l.b16 %v127
  %v572 = vunpack.c.l.b16 %v128
  %v573 = vunpack.c.l.b16 %v129
  %v574 = vunpack.c.l.b16 %v130
  %v575 = vunpack.c.l.b16 %v131
  %v576 = vunpack.c.l.b16 %v132
  %v577 = vunpack.c.l.b16 %v133
  %v578 = vunpack.c.l.b16 %v134
  %v579 = vunpack.c.l.b16 %v135
  %v580 = vunpack.c.l.b16 %v136
  %v581 = vunpack.c.l.b16 %v137
  %v582 = vunpack.c.l.b16 %v138
  %v583 = vunpack.c.l.b16 %v139
  %v584 = vunpack.c.l.b16 %v140
  %v585 = vunpack.c.l.b16 %v141
  %v586 = vunpack.c.l.b16 %v142
  %v587 = vunpack.c.l.b16 %v143
  %v588 = vunpack.c.l.b16 %v144
  %v589 = vunpack.c.l.b16 %v145
  %v590 = vunpack.c.l.b16 %v146
  %v591 = vunpack.c.l.b16 %v147
  %v592 = vunpack.c.l.b16 %v148
  %v593 = vunpack.c.l.b16 %v149
  %v594 = vunpack.c.l.b16 %v150
  %v595 = vunpack.c.l.b16 %v151
  %v596 = vunpack.c.l.b16 %v152
  %v597 = vunpack.c.l.b16 %v153
  %v598 = vunpack.c.l.b16 %v154
  %v599 = vunpack.c.l.b16 %v155
  %v600 = vunpack.c.l.b16 %v156
  %v601 = vunpack.c.l.b16 %v157
  %v602 = vunpack.c.l.b16 %v158
  %v603 = vunpack.c.l.b16 %v159
  %v604 = vunpack.c.l.b16 %v160
  %v605 = vunpack.c.l.b16 %v161
  %v606 = vunpack.c.l.b16 %v162
  %v607 = vunpack.c.l.b16 %v163
  %v608 = vunpack.c.l.b16 %v164
  %v609 = vunpack.c.l.b16 %v165
  %v610 = vunpack.c.l.b16 %v166
  %v611 = vunpack.c.l.b16 %v167
  %v612 = vunpack.c.l.b16 %v168
  %v613 = vunpack.c.l.b16 %v169
  %v614 = vunpack.c.l.b16 %v170
  %v615 = vunpack.c.l.b16 %v171
  %v616 = vunpack.c.l.b16 %v172
  %v617 = vunpack.c.l.b16 %v173
  %v618 = vunpack.c.l.b16 %v174
  %v619 = vunpack.c.l.b16 %v175
  %v620 = vunpack.c.l.b16 %v176
  %v621 = vunpack.c.l.b16 %v177
  %v622 = vunpack.c.l.b16 %v178
  %v623 = vunpack.c.l.b16 %v179
  %v624 = vunpack.c.l.b16 %v180
  %v625 = vunpack.c.l.b16 %v181
  %v626 = vunpack.c.l.b16 %v182
  %v627 = vunpack.c.l.b16 %v183
  %v628 = vunpack.c.l.b16 %v184
  %v629 = vunpack.c.l.b16 %v185
  %v630 = vunpack.c.l.b16 %v186
  %v631 = vunpack.c.l.b16 %v187
  %v632 = vunpack.c.l.b16 %v188
  %v633 = vunpack.c.l.b16 %v189
  %v634 = vunpack.c.l.b16 %v190
  %v635 = vunpack.c.l.b16 %v191
  %v636 = vunpack.c.l.b16 %v192
  %v637 = vunpack.c.l.b16 %v193
  %v638 = vunpack.c.l.b16 %v194
  %v639 = vunpack.c.l.b16 %v195
  %v640 = vunpack.c.l.b16 %v196
  %v641 = vunpack.c.l.b16 %v197
  %v642 = vunpack.c.l.b16 %v198
  %v643 = vunpack.c.l.b16 %v199
  %v644 = vunpack.c.l.b16 %v200
  %v645 = vunpack.c.l.b16 %v201
  %v646 = vunpack.c.l.b16 %v202
  %v647 = vunpack.c.l.b16 %v203
  %v648 = vunpack.c.l.b16 %v204
  %v649 = vunpack.c.l.b16 %v205
  %v650 = vunpack.c.l.b16 %v206
  %v651 = vunpack.c.l.b16 %v207
  %v652 = vunpack.c.l.b16 %v208
  %v653 = vunpack.c.l.b16 %v209
  %v654 = vunpack.c.l.b16 %v210
  %v655 = vunpack.c.l.b16 %v211
  %v656 = vunpack.c.l.b16 %v212
  %v657 = vunpack.c.l.b16 %v213
  %v658 = vunpack.c.l.b16 %v214
  %v659 = vunpack.c.l.b16 %v215
  %v660 = vunpack.c.l.b16 %v216
  %v661 = vunpack.c.l.b16 %v217
  %v662 = vpack.c.b16 %v467, %v466
  %v663 = vpack.c.b16 %v469, %v468
  %v664 = vpack.c.b16 %v471, %v470
  %v665 = vpack.c.b16 %v473, %v472
  %v666 = vpack.c.b16 %v475, %v474
  %v667 = vpack.c.b16 %v477, %v476
  %v668 = vpack.c.b16 %v479, %v478
  %v669 = vpack.c.b16 %v481, %v480
  %v670 = vpack.c.b16 %v483, %v482
  %v671 = vpack.c.b16 %v485, %v484
  %v672 = vpack.c.b16 %v487, %v486
  %v673 = vpack.c.b16 %v489, %v488
  %v674 = vpack.c.b16 %v491, %v490
  %v675 = vpack.c.b16 %v493, %v492
  %v676 = vpack.c.b16 %v495, %v494
  %v677 = vpack.c.b16 %v497, %v496
  %v678 = vpack.c.b16 %v499, %v498
  %v679 = vpack.c.b16 %v501, %v500
  %v680 = vpack.c.b16 %v503, %v502
  %v681 = vpack.c.b16 %v505, %v504
  %v682 = vpack.c.b16 %v507, %v506
  %v683 = vpack.c.b16 %v509, %v508
  %v684 = vpack.c.b16 %v511, %v510
  %v685 = vpack.c.b16 %v513, %v512
  %v686 = vpack.c.b16 %v515, %v514
  %v687 = vpack.c.b16 %v517, %v516
  %v688 = vpack.c.b16 %v519, %v518
  %v689 = vpack.c.b16 %v521, %v520
  %v690 = vpack.c.b16 %v523, %v522
  %v691 = vpack.c.b16 %v525, %v524
  %v692 = vpack.c.b16 %v527, %v526
  %v693 = vpack.c.b16 %v529, %v528
  %v694 = vpack.c.b16 %v531, %v530
  %v695 = vpack.c.b16 %v533, %v532
  %v696 = vpack.c.b16 %v535, %v534
  %v697 = vpack.c.b16 %v537, %v536
  %v698 = vpack.c.b16 %v539, %v538
  %v699 = vpack.c.b16 %v541, %v540
  %v700 = vpack.c.b16 %v543, %v542
  %v701 = vpack.c.b16 %v545, %v544
  %v702 = vpack.c.b16 %v547, %v546
  %v703 = vpack.c.b16 %v549, %v548
  %v704 = vpack.c.b16 %v551, %v550
  %v705 = vpack.c.b16 %v553, %v552
  %v706 = vpack.c.b16 %v555, %v554
  %v707 = vpack.c.b16 %v557, %v556
  %v708 = vpack.c.b16 %v559, %v558
  %v709 = vpack.c.b16 %v561, %v560
  %v710 = vpack.c.b16 %v563, %v562
  %v711 = vpack.c.b16 %v565, %v564
  %v712 = vpack.c.b16 %v567, %v566
  %v713 = vpack.c.b16 %v569, %v568
  %v714 = vpack.c.b16 %v571, %v570
  %v715 = vpack.c.b16 %v573, %v572
  %v716 = vpack.c.b16 %v575, %v574
  %v717 = vpack.c.b16 %v577, %v576
  %v718 = vpack.c.b16 %v579, %v578
  %v719 = vpack.c.b16 %v581, %v580
  %v720 = vpack.c.b16 %v583, %v582
  %v721 = vpack.c.b16 %v585, %v584
  %v722 = vpack.c.b16 %v587, %v586
  %v723 = vpack.c.b16 %v589, %v588
  %v724 = vpack.c.b16 %v591, %v590
  %v725 = vpack.c.b16 %v593, %v592
  %v726 = vpack.c.b16 %v595, %v594
  %v727 = vpack.c.b16 %v597, %v596
  %v728 = vpack.c.b16 %v599, %v598
  %v729 = vpack.c.b16 %v601, %v600
  %v730 = vpack.c.b16 %v603, %v602
  %v731 = vpack.c.b16 %v605, %v604
  %v732 = vpack.c.b16 %v607, %v606
  %v733 = vpack.c.b16 %v609, %v608
  %v734 = vpack.c.b16 %v611, %v610
  %v735 = vpack.c.b16 %v613, %v612
  %v736 = vpack.c.b16 %v615, %v614
  %v737 = vpack.c.b16 %v617, %v616
  %v738 = vpack.c.b16 %v619, %v618
  %v739 = vpack.c.b16 %v621, %v620
  %v740 = vpack.c.b16 %v623, %v622
  %v741 = vpack.c.b16 %v625, %v624
  %v742 = vpack.c.b16 %v627, %v626
  %v743 = vpack.c.b16 %v629, %v628
  %v744 = vpack.c.b16 %v631, %v630
  %v745 = vpack.c.b16 %v633, %v632
  %v746 = vpack.c.b16 %v635, %v634
  %v747 = vpack.c.b16 %v637, %v636
  %v748 = vpack.c.b16 %v639, %v638
  %v749 = vpack.c.b16 %v641, %v640
  %v750 = vpack.c.b16 %v643, %v642
  %v751 = vpack.c.b16 %v645, %v644
  %v752 = vpack.c.b16 %v647, %v646
  %v753 = vpack.c.b16 %v649, %v648
  %v754 = vpack.c.b16 %v651, %v650
  %v755 = vpack.c.b16 %v653, %v652
  %v756 = vpack.c.b16 %v655, %v654
  %v757 = vpack.c.b16 %v657, %v656
  %v758 = vpack.c.b16 %v659, %v658
  %v759 = vpack.c.b16 %v661, %v660
  %vm858 = vcmask 261120
  %v860 = vsel %vm858, %v257, 0
  %862 = vmatprep.subr.bf16.mxu0 0
  %863 = vmatpush1.bf16.msra.mxu0 %v669
  %864 = vmatprep.subr.bf16.mxu0 0
  %865 = vmatpush1.bf16.msra.mxu0 %v668
  %866 = vmatprep.subr.bf16.mxu0 0
  %867 = vmatpush1.bf16.msra.mxu0 %v667
  %868 = vmatprep.subr.bf16.mxu0 0
  %869 = vmatpush1.bf16.msra.mxu0 %v666
  %870 = vmatprep.subr.bf16.mxu0 0
  %871 = vmatpush1.bf16.msra.mxu0 %v665
  %872 = vmatprep.subr.bf16.mxu0 0
  %873 = vmatpush1.bf16.msra.mxu0 %v664
  %874 = vmatprep.subr.bf16.mxu0 0
  %875 = vmatpush1.bf16.msra.mxu0 %v663
  %876 = vmatprep.subr.bf16.mxu0 0
  %877 = vmatpush1.bf16.msra.mxu0 %v662
  %878 = vmatprep.subr.bf16.mxu0 0
  %879 = vmatpush2.bf16.msra.mxu0 %v677
  %880 = vmatprep.subr.bf16.mxu0 0
  %881 = vmatpush2.bf16.msra.mxu0 %v676
  %882 = vmatprep.subr.bf16.mxu0 0
  %883 = vmatpush2.bf16.msra.mxu0 %v675
  %884 = vmatprep.subr.bf16.mxu0 0
  %885 = vmatpush2.bf16.msra.mxu0 %v674
  %886 = vmatprep.subr.bf16.mxu0 0
  %887 = vmatpush2.bf16.msra.mxu0 %v673
  %888 = vmatprep.subr.bf16.mxu0 0
  %889 = vmatpush2.bf16.msra.mxu0 %v672
  %890 = vmatprep.subr.bf16.mxu0 0
  %891 = vmatpush2.bf16.msra.mxu0 %v671
  %892 = vmatprep.subr.bf16.mxu0 0
  %893 = vmatpush2.bf16.msra.mxu0 %v670
  %894 = vmatprep.mubr.bf16.mxu0 %v246
  %895 = vmatmul.mubr.bf16.gmra.mxu0 %v245
  %v896 = vpop.f32.mrf.mxu0
  %v897 = vadd.f32 %v223, %v896
  %v898 = vpop.f32.mrf.mxu0
  %v899 = vpop.f32.mrf.mxu0
  %v900 = vpop.f32.mrf.mxu0
  %901 = vdwg.mxu0
  %902 = vmatprep.subr.bf16.mxu0 0
  %903 = vmatpush1.bf16.msra.mxu0 %v685
  %904 = vmatprep.subr.bf16.mxu0 0
  %905 = vmatpush1.bf16.msra.mxu0 %v684
  %906 = vmatprep.subr.bf16.mxu0 0
  %907 = vmatpush1.bf16.msra.mxu0 %v683
  %908 = vmatprep.subr.bf16.mxu0 0
  %909 = vmatpush1.bf16.msra.mxu0 %v682
  %910 = vmatprep.subr.bf16.mxu0 0
  %911 = vmatpush1.bf16.msra.mxu0 %v681
  %912 = vmatprep.subr.bf16.mxu0 0
  %913 = vmatpush1.bf16.msra.mxu0 %v680
  %914 = vmatprep.subr.bf16.mxu0 0
  %915 = vmatpush1.bf16.msra.mxu0 %v679
  %916 = vmatprep.subr.bf16.mxu0 0
  %917 = vmatpush1.bf16.msra.mxu0 %v678
  %918 = vmatprep.subr.bf16.mxu0 0
  %919 = vmatpush2.bf16.msra.mxu0 %v693
  %920 = vmatprep.subr.bf16.mxu0 0
  %921 = vmatpush2.bf16.msra.mxu0 %v692
  %922 = vmatprep.subr.bf16.mxu0 0
  %923 = vmatpush2.bf16.msra.mxu0 %v691
  %924 = vmatprep.subr.bf16.mxu0 0
  %925 = vmatpush2.bf16.msra.mxu0 %v690
  %926 = vmatprep.subr.bf16.mxu0 0
  %927 = vmatpush2.bf16.msra.mxu0 %v689
  %928 = vmatprep.subr.bf16.mxu0 0
  %929 = vmatpush2.bf16.msra.mxu0 %v688
  %930 = vmatprep.subr.bf16.mxu0 0
  %931 = vmatpush2.bf16.msra.mxu0 %v687
  %932 = vmatprep.subr.bf16.mxu0 0
  %933 = vmatpush2.bf16.msra.mxu0 %v686
  %934 = vmatprep.mubr.bf16.mxu0 %v248
  %935 = vmatmul.mubr.bf16.gmra.mxu0 %v247
  %v936 = vpop.f32.mrf.mxu0
  %v937 = vadd.f32 %v897, %v936
  %v938 = vpop.f32.mrf.mxu0
  %v939 = vpop.f32.mrf.mxu0
  %v940 = vpop.f32.mrf.mxu0
  %941 = vdwg.mxu0
  %942 = vmatprep.subr.bf16.mxu0 0
  %943 = vmatpush1.bf16.msra.mxu0 %v701
  %944 = vmatprep.subr.bf16.mxu0 0
  %945 = vmatpush1.bf16.msra.mxu0 %v700
  %946 = vmatprep.subr.bf16.mxu0 0
  %947 = vmatpush1.bf16.msra.mxu0 %v699
  %948 = vmatprep.subr.bf16.mxu0 0
  %949 = vmatpush1.bf16.msra.mxu0 %v698
  %950 = vmatprep.subr.bf16.mxu0 0
  %951 = vmatpush1.bf16.msra.mxu0 %v697
  %952 = vmatprep.subr.bf16.mxu0 0
  %953 = vmatpush1.bf16.msra.mxu0 %v696
  %954 = vmatprep.subr.bf16.mxu0 0
  %955 = vmatpush1.bf16.msra.mxu0 %v695
  %956 = vmatprep.subr.bf16.mxu0 0
  %957 = vmatpush1.bf16.msra.mxu0 %v694
  %958 = vmatprep.subr.bf16.mxu0 0
  %959 = vmatpush2.bf16.msra.mxu0 %v709
  %960 = vmatprep.subr.bf16.mxu0 0
  %961 = vmatpush2.bf16.msra.mxu0 %v708
  %962 = vmatprep.subr.bf16.mxu0 0
  %963 = vmatpush2.bf16.msra.mxu0 %v707
  %964 = vmatprep.subr.bf16.mxu0 0
  %965 = vmatpush2.bf16.msra.mxu0 %v706
  %966 = vmatprep.subr.bf16.mxu0 0
  %967 = vmatpush2.bf16.msra.mxu0 %v705
  %968 = vmatprep.subr.bf16.mxu0 0
  %969 = vmatpush2.bf16.msra.mxu0 %v704
  %970 = vmatprep.subr.bf16.mxu0 0
  %971 = vmatpush2.bf16.msra.mxu0 %v703
  %972 = vmatprep.subr.bf16.mxu0 0
  %973 = vmatpush2.bf16.msra.mxu0 %v702
  %974 = vmatprep.mubr.bf16.mxu0 %v250
  %975 = vmatmul.mubr.bf16.gmra.mxu0 %v249
  %v976 = vpop.f32.mrf.mxu0
  %v977 = vadd.f32 %v937, %v976
  %v978 = vpop.f32.mrf.mxu0
  %v979 = vpop.f32.mrf.mxu0
  %v980 = vpop.f32.mrf.mxu0
  %981 = vdwg.mxu0
  %982 = vmatprep.subr.bf16.mxu0 0
  %983 = vmatpush1.bf16.msra.mxu0 %v717
  %984 = vmatprep.subr.bf16.mxu0 0
  %985 = vmatpush1.bf16.msra.mxu0 %v716
  %986 = vmatprep.subr.bf16.mxu0 0
  %987 = vmatpush1.bf16.msra.mxu0 %v715
  %988 = vmatprep.subr.bf16.mxu0 0
  %989 = vmatpush1.bf16.msra.mxu0 %v714
  %990 = vmatprep.subr.bf16.mxu0 0
  %991 = vmatpush1.bf16.msra.mxu0 %v713
  %992 = vmatprep.subr.bf16.mxu0 0
  %993 = vmatpush1.bf16.msra.mxu0 %v712
  %994 = vmatprep.subr.bf16.mxu0 0
  %995 = vmatpush1.bf16.msra.mxu0 %v711
  %996 = vmatprep.subr.bf16.mxu0 0
  %997 = vmatpush1.bf16.msra.mxu0 %v710
  %998 = vmatprep.subr.bf16.mxu0 0
  %999 = vmatpush2.bf16.msra.mxu0 %v725
  %1000 = vmatprep.subr.bf16.mxu0 0
  %1001 = vmatpush2.bf16.msra.mxu0 %v724
  %1002 = vmatprep.subr.bf16.mxu0 0
  %1003 = vmatpush2.bf16.msra.mxu0 %v723
  %1004 = vmatprep.subr.bf16.mxu0 0
  %1005 = vmatpush2.bf16.msra.mxu0 %v722
  %1006 = vmatprep.subr.bf16.mxu0 0
  %1007 = vmatpush2.bf16.msra.mxu0 %v721
  %1008 = vmatprep.subr.bf16.mxu0 0
  %1009 = vmatpush2.bf16.msra.mxu0 %v720
  %1010 = vmatprep.subr.bf16.mxu0 0
  %1011 = vmatpush2.bf16.msra.mxu0 %v719
  %1012 = vmatprep.subr.bf16.mxu0 0
  %1013 = vmatpush2.bf16.msra.mxu0 %v718
  %1014 = vmatprep.mubr.bf16.mxu0 %v252
  %1015 = vmatmul.mubr.bf16.gmra.mxu0 %v251
  %v1016 = vpop.f32.mrf.mxu0
  %v1017 = vadd.f32 %v977, %v1016
  %v1018 = vpop.f32.mrf.mxu0
  %v1019 = vpop.f32.mrf.mxu0
  %v1020 = vpop.f32.mrf.mxu0
  %1021 = vdwg.mxu0
  %1022 = vmatprep.subr.bf16.mxu0 0
  %1023 = vmatpush1.bf16.msra.mxu0 %v733
  %1024 = vmatprep.subr.bf16.mxu0 0
  %1025 = vmatpush1.bf16.msra.mxu0 %v732
  %1026 = vmatprep.subr.bf16.mxu0 0
  %1027 = vmatpush1.bf16.msra.mxu0 %v731
  %1028 = vmatprep.subr.bf16.mxu0 0
  %1029 = vmatpush1.bf16.msra.mxu0 %v730
  %1030 = vmatprep.subr.bf16.mxu0 0
  %1031 = vmatpush1.bf16.msra.mxu0 %v729
  %1032 = vmatprep.subr.bf16.mxu0 0
  %1033 = vmatpush1.bf16.msra.mxu0 %v728
  %1034 = vmatprep.subr.bf16.mxu0 0
  %1035 = vmatpush1.bf16.msra.mxu0 %v727
  %1036 = vmatprep.subr.bf16.mxu0 0
  %1037 = vmatpush1.bf16.msra.mxu0 %v726
  %1038 = vmatprep.subr.bf16.mxu0 0
  %1039 = vmatpush2.bf16.msra.mxu0 %v741
  %1040 = vmatprep.subr.bf16.mxu0 0
  %1041 = vmatpush2.bf16.msra.mxu0 %v740
  %1042 = vmatprep.subr.bf16.mxu0 0
  %1043 = vmatpush2.bf16.msra.mxu0 %v739
  %1044 = vmatprep.subr.bf16.mxu0 0
  %1045 = vmatpush2.bf16.msra.mxu0 %v738
  %1046 = vmatprep.subr.bf16.mxu0 0
  %1047 = vmatpush2.bf16.msra.mxu0 %v737
  %1048 = vmatprep.subr.bf16.mxu0 0
  %1049 = vmatpush2.bf16.msra.mxu0 %v736
  %1050 = vmatprep.subr.bf16.mxu0 0
  %1051 = vmatpush2.bf16.msra.mxu0 %v735
  %1052 = vmatprep.subr.bf16.mxu0 0
  %1053 = vmatpush2.bf16.msra.mxu0 %v734
  %1054 = vmatprep.mubr.bf16.mxu0 %v254
  %1055 = vmatmul.mubr.bf16.gmra.mxu0 %v253
  %v1056 = vpop.f32.mrf.mxu0
  %v1057 = vadd.f32 %v1017, %v1056
  %v1058 = vpop.f32.mrf.mxu0
  %v1059 = vpop.f32.mrf.mxu0
  %v1060 = vpop.f32.mrf.mxu0
  %1061 = vdwg.mxu0
  %1062 = vmatprep.subr.bf16.mxu0 0
  %1063 = vmatpush1.bf16.msra.mxu0 %v749
  %1064 = vmatprep.subr.bf16.mxu0 0
  %1065 = vmatpush1.bf16.msra.mxu0 %v748
  %1066 = vmatprep.subr.bf16.mxu0 0
  %1067 = vmatpush1.bf16.msra.mxu0 %v747
  %1068 = vmatprep.subr.bf16.mxu0 0
  %1069 = vmatpush1.bf16.msra.mxu0 %v746
  %1070 = vmatprep.subr.bf16.mxu0 0
  %1071 = vmatpush1.bf16.msra.mxu0 %v745
  %1072 = vmatprep.subr.bf16.mxu0 0
  %1073 = vmatpush1.bf16.msra.mxu0 %v744
  %1074 = vmatprep.subr.bf16.mxu0 0
  %1075 = vmatpush1.bf16.msra.mxu0 %v743
  %1076 = vmatprep.subr.bf16.mxu0 0
  %1077 = vmatpush1.bf16.msra.mxu0 %v742
  %1078 = vmatprep.subr.bf16.mxu0 0
  %1079 = vmatpush2.bf16.msra.mxu0 %v757
  %1080 = vmatprep.subr.bf16.mxu0 0
  %1081 = vmatpush2.bf16.msra.mxu0 %v756
  %1082 = vmatprep.subr.bf16.mxu0 0
  %1083 = vmatpush2.bf16.msra.mxu0 %v755
  %1084 = vmatprep.subr.bf16.mxu0 0
  %1085 = vmatpush2.bf16.msra.mxu0 %v754
  %1086 = vmatprep.subr.bf16.mxu0 0
  %1087 = vmatpush2.bf16.msra.mxu0 %v753
  %1088 = vmatprep.subr.bf16.mxu0 0
  %1089 = vmatpush2.bf16.msra.mxu0 %v752
  %1090 = vmatprep.subr.bf16.mxu0 0
  %1091 = vmatpush2.bf16.msra.mxu0 %v751
  %1092 = vmatprep.subr.bf16.mxu0 0
  %1093 = vmatpush2.bf16.msra.mxu0 %v750
  %1094 = vmatprep.mubr.bf16.mxu0 %v256
  %1095 = vmatmul.mubr.bf16.gmra.mxu0 %v255
  %v1096 = vpop.f32.mrf.mxu0
  %v1097 = vadd.f32 %v1057, %v1096
  %v1098 = vpop.f32.mrf.mxu0
  %v1099 = vpop.f32.mrf.mxu0
  %v1100 = vpop.f32.mrf.mxu0
  %1101 = vdwg.mxu0
  %1102 = vmatprep.subr.bf16.mxu0 0
  %1103 = vmatpush1.bf16.msra.mxu0 0
  %1104 = vmatprep.subr.bf16.mxu0 0
  %1105 = vmatpush1.bf16.msra.mxu0 0
  %1106 = vmatprep.subr.bf16.mxu0 0
  %1107 = vmatpush1.bf16.msra.mxu0 0
  %1108 = vmatprep.subr.bf16.mxu0 0
  %1109 = vmatpush1.bf16.msra.mxu0 0
  %1110 = vmatprep.subr.bf16.mxu0 0
  %1111 = vmatpush1.bf16.msra.mxu0 0
  %1112 = vmatprep.subr.bf16.mxu0 0
  %1113 = vmatpush1.bf16.msra.mxu0 0
  %1114 = vmatprep.subr.bf16.mxu0 0
  %1115 = vmatpush1.bf16.msra.mxu0 %v759
  %1116 = vmatprep.subr.bf16.mxu0 0
  %1117 = vmatpush1.bf16.msra.mxu0 %v758
  %1118 = vmatprep.subr.bf16.mxu0 0
  %1119 = vmatpush2.bf16.msra.mxu0 0
  %1120 = vmatprep.subr.bf16.mxu0 0
  %1121 = vmatpush2.bf16.msra.mxu0 0
  %1122 = vmatprep.subr.bf16.mxu0 0
  %1123 = vmatpush2.bf16.msra.mxu0 0
  %1124 = vmatprep.subr.bf16.mxu0 0
  %1125 = vmatpush2.bf16.msra.mxu0 0
  %1126 = vmatprep.subr.bf16.mxu0 0
  %1127 = vmatpush2.bf16.msra.mxu0 0
  %1128 = vmatprep.subr.bf16.mxu0 0
  %1129 = vmatpush2.bf16.msra.mxu0 0
  %1130 = vmatprep.subr.bf16.mxu0 0
  %1131 = vmatpush2.bf16.msra.mxu0 0
  %1132 = vmatprep.subr.bf16.mxu0 0
  %1133 = vmatpush2.bf16.msra.mxu0 0
  %1134 = vmatprep.mubr.bf16.mxu0 0
  %1135 = vmatmul.mubr.bf16.gmra.mxu0 %v860
  %v1136 = vpop.f32.mrf.mxu0
  %v1137 = vadd.f32 %v1097, %v1136
  %v1138 = vpop.f32.mrf.mxu0
  %v1139 = vpop.f32.mrf.mxu0
  %v1140 = vpop.f32.mrf.mxu0
  %1141 = vdwg.mxu0
  %1142 = vst [vmem:[%s3] sm:$0xff] %v1137
  // Predicated region
  $region14: #{cnn_forward.5} parent=0 // pred_check
    _
  $region15: #{cnn_forward.5} parent=0 // pred_check_branch
    %1144 = sbr.rel (0) target = $region17
  $region16: #{cnn_forward.5} parent=0 // pred_region
    _
  $region17: #{cnn_forward.5} parent=0 // pred_fallthru
    _
  // Predicated region
  $region18: #{cnn_forward.5} parent=0 // pred_check
    _
  $region19: #{cnn_forward.5} parent=0 // pred_check_branch
    %1146 = sbr.rel (0) target = $region21
  $region20: #{cnn_forward.5} parent=0 // pred_region
    _
  $region21: #{cnn_forward.5} parent=0 // pred_fallthru
    _

</llo_original>
